<compile_context>
chip_gen: v5e
topology: v5e:2x2
jax: 0.10.0
libtpu: 0.0.40
codegen_flags: <defaults>
</compile_context>

<pallas_src>
import numpy as np

import jax
import jax.numpy as jnp
from jax import lax
from jax.experimental import pallas as pl
from jax.experimental.pallas import tpu as pltpu


# ---------------------------------------------------------------------------
# Kernels
# ---------------------------------------------------------------------------

def _gram_kernel(k_ref, w0t_ref, mask_ref, g_ref, acc_ref):
    """Pass 1. grid = (batch, k_tile). Builds the per-batch Gram matrix
       G = mask * (kqv^T @ kqv), kqv = K @ W0^T, streaming K tile-by-tile."""
    j = pl.program_id(1)

    @pl.when(j == 0)
    def _():
        acc_ref[...] = jnp.zeros_like(acc_ref)

    cdt = k_ref.dtype  # MXU input dtype (f32 or bf16 via the wrapper knob)
    kqv = jnp.dot(k_ref[0], w0t_ref[...],
                  preferred_element_type=jnp.float32).astype(cdt)   # (tk, HDp)
    # G += kqv^T @ kqv  (contraction over the sequence-tile axis).
    acc_ref[...] += lax.dot_general(kqv, kqv, (((0,), (0,)), ((), ())),
                                    preferred_element_type=jnp.float32)

    @pl.when(j == pl.num_programs(1) - 1)
    def _():
        # mask = scale * block-diag(head), precomputed in the wrapper.
        g_ref[0] = (acc_ref[...] * mask_ref[...]).astype(g_ref.dtype)


def _apply_kernel(q_ref, g_ref, w0t_ref, w1t_ref, o_ref):
    """Pass 2. grid = (batch, q_tile). out = ((q @ W0^T) @ G) @ W1^T."""
    cdt = q_ref.dtype
    qk = jnp.dot(q_ref[0], w0t_ref[...],
                 preferred_element_type=jnp.float32).astype(cdt)    # (tq, HDp)
    # TODO(synk): for n_head >= 4 on v5e, a per-head batched dot_general over
    # (H, tq, Dh) x (H, Dh, Dh) avoids the (H-1)/H multiply-by-zero MACs of
    # this fused block-diagonal form; kept fused (lane-dense) for low H.
    o = jnp.dot(qk, g_ref[0], preferred_element_type=jnp.float32).astype(cdt)
    out = jnp.dot(o, w1t_ref[...], preferred_element_type=jnp.float32)
    o_ref[0] = out.astype(o_ref.dtype)


# ---------------------------------------------------------------------------
# Wrapper helpers
# ---------------------------------------------------------------------------

def _pick_tile(S, dtype):
    """Largest tile (multiple of the dtype's min sublane tile) dividing S."""
    min_sublane = {4: 8, 2: 16, 1: 32}.get(np.dtype(dtype).itemsize, 8)
    for t in (2048, 1024, 512, 256, 128, 64, 32, 16, 8):
        if t <= S and S % t == 0 and t % min_sublane == 0:
            return t
    return S  # full-extent block: always legal


def _vmem_limit_bytes():
    """Generation-aware VMEM limit (~80% of physical capacity)."""
    try:
        cap = int(pltpu.get_tpu_info().vmem_capacity_bytes)
    except Exception:
        cap = 64 * 1024 * 1024  # conservative fallback (v7x per-core VMEM)
    return max(32 * 1024 * 1024, int(cap * 0.8))


def _forward_impl(q, k, w0t, w1t, mask, *, hdh_pad, tk, tq, out_dtype,
                  vmem_limit, weight_buffers):
    B, S, Dm = q.shape
    cdt = q.dtype

    def resident(shape, index_map):
        # Constant-index operands: single-buffer when supported (their block
        # index never changes, so double buffering only wastes VMEM).
        if weight_buffers is not None:
            return pl.BlockSpec(shape, index_map,
                                pipeline_mode=pl.Buffered(weight_buffers))
        return pl.BlockSpec(shape, index_map)

    # ---- Pass 1: per-batch block-diagonal, pre-scaled Gram matrix ---------
    gram = pl.pallas_call(
        _gram_kernel,
        out_shape=jax.ShapeDtypeStruct((B, hdh_pad, hdh_pad), cdt),
        grid_spec=pltpu.PrefetchScalarGridSpec(
            num_scalar_prefetch=0,
            grid=(B, S // tk),
            in_specs=[
                pl.BlockSpec((1, tk, Dm), lambda b, j: (b, j, 0)),   # K tile
                resident((Dm, hdh_pad), lambda b, j: (0, 0)),        # W0^T
                resident((hdh_pad, hdh_pad), lambda b, j: (0, 0)),   # mask
            ],
            out_specs=pl.BlockSpec((1, hdh_pad, hdh_pad),
                                   lambda b, j: (b, 0, 0)),
            scratch_shapes=[pltpu.VMEM((hdh_pad, hdh_pad), jnp.float32)],
        ),
        compiler_params=pltpu.CompilerParams(
            dimension_semantics=("parallel", "arbitrary"),
            vmem_limit_bytes=vmem_limit),
    )(k, w0t, mask)

    # ---- Pass 2: out = ((q @ W0^T) @ G) @ W1^T -----------------------------
    return pl.pallas_call(
        _apply_kernel,
        out_shape=jax.ShapeDtypeStruct((B, S, Dm), out_dtype),
        grid_spec=pltpu.PrefetchScalarGridSpec(
            num_scalar_prefetch=0,
            grid=(B, S // tq),
            in_specs=[
                pl.BlockSpec((1, tq, Dm), lambda b, i: (b, i, 0)),   # q tile
                pl.BlockSpec((1, hdh_pad, hdh_pad),
                             lambda b, i: (b, 0, 0)),                # G (per b)
                resident((Dm, hdh_pad), lambda b, i: (0, 0)),        # W0^T
                resident((hdh_pad, Dm), lambda b, i: (0, 0)),        # W1^T
            ],
            out_specs=pl.BlockSpec((1, tq, Dm), lambda b, i: (b, i, 0)),
        ),
        compiler_params=pltpu.CompilerParams(
            dimension_semantics=("parallel", "parallel"),
            vmem_limit_bytes=vmem_limit),
    )(q, gram, w0t, w1t)


def attention_forward(q, k, v, segment, w0, w1, *, n_head, d_model, d_head,
                      matmul_dtype=None):
    """Forward of the reference Attention module's (q != k != v) branch.

    matmul_dtype: optional MXU input dtype (e.g. jnp.bfloat16 on v6e/v7x).
    Accumulation stays f32; the output keeps q.dtype.
    """
    # TODO(synk): `v` and `segment` are unused in the reference else-branch.
    del v, segment
    B, S, Dm = q.shape
    assert Dm == d_model
    hdh = n_head * d_head
    scale = float((d_model // n_head) ** (-0.5))
    out_dtype = q.dtype

    # Pad the head dimension to a lane-dense multiple of 128 (exact: zero
    # columns of W0^T / zero rows of W1^T contribute nothing).
    hdh_pad = max(128, ((hdh + 127) // 128) * 128)

    # Pre-transpose weights to natural (K, N) layout (layout plumbing outside
    # the kernel; no in-kernel XLU relayout of the weight tiles).
    w0t = jnp.transpose(w0)             # (Dm, HDh)
    w1t = jnp.transpose(w1)             # (HDh, Dm)
    if hdh_pad != hdh:
        w0t = jnp.pad(w0t, ((0, 0), (0, hdh_pad - hdh)))
        w1t = jnp.pad(w1t, ((0, hdh_pad - hdh), (0, 0)))

    # Hoisted, pre-scaled block-diagonal head mask for the Gram matrix.
    idx = jnp.arange(hdh_pad)
    head_id = idx // d_head
    valid = idx < hdh
    mask = ((head_id[:, None] == head_id[None, :])
            & valid[:, None] & valid[None, :]).astype(jnp.float32) * scale

    cdt = np.dtype(matmul_dtype) if matmul_dtype is not None else q.dtype
    q_c = q.astype(cdt)
    k_c = k.astype(cdt)
    w0t = w0t.astype(cdt)
    w1t = w1t.astype(cdt)

    kwargs = dict(hdh_pad=hdh_pad,
                  tk=_pick_tile(S, cdt),
                  tq=_pick_tile(S, cdt),
                  out_dtype=out_dtype,
                  vmem_limit=_vmem_limit_bytes())
    try:
        return _forward_impl(q_c, k_c, w0t, w1t, mask,
                             weight_buffers=1, **kwargs)
    except Exception:
        # pipeline_mode=pl.Buffered(1) unsupported on this jax/libtpu combo —
        # fall back to default-buffered resident operands (correctness same).
        return _forward_impl(q_c, k_c, w0t, w1t, mask,
                             weight_buffers=None, **kwargs)


# ---------------------------------------------------------------------------
# Pure-JAX reference (original scores form) + self-test
# ---------------------------------------------------------------------------

def _reference(q, k, w0, w1, *, n_head, d_model, d_head):
    scale = (d_model // n_head) ** (-0.5)
    qk = jnp.einsum("bsd,od->bso", q, w0) * scale
    kqv = jnp.einsum("bsd,od->bso", k, w0)
    outs = []
    for h in range(n_head):
        qh = qk[..., h * d_head:(h + 1) * d_head]
        kh = kqv[..., h * d_head:(h + 1) * d_head]
        s = jnp.einsum("bqd,bkd->bqk", qh, kh)
        outs.append(jnp.einsum("bqk,bkd->bqd", s, kh))
    o = jnp.concatenate(outs, axis=-1)
    return jnp.einsum("bso,do->bsd", o, w1)


def _run_case(key, B, S, n_head, d_model, d_head, matmul_dtype=None,
              atol=1e-3, rtol=1e-3):
    k1, k2, k3, k4, k5 = jax.random.split(key, 5)
    q = jax.random.normal(k1, (B, S, d_model), dtype=jnp.float32)
    k_in = jax.random.normal(k2, (B, S, d_model), dtype=jnp.float32)
    v = jax.random.normal(k3, (B, S, d_model), dtype=jnp.float32)
    segment = jnp.zeros((B, S), dtype=jnp.int32)

    hdh = d_head * n_head
    w0 = jax.random.normal(k4, (hdh, d_model), dtype=jnp.float32)
    w0 = w0 * (1.0 / jnp.sqrt(jnp.float32(d_model)))
    w1 = jax.random.normal(k5, (d_model, hdh), dtype=jnp.float32)
    w1 = w1 * (1.0 / jnp.sqrt(jnp.float32(hdh)))

    out = attention_forward(q, k_in, v, segment, w0, w1,
                            n_head=n_head, d_model=d_model, d_head=d_head,
                            matmul_dtype=matmul_dtype)
    out = jax.block_until_ready(out)

    ref = _reference(q, k_in, w0, w1,
                     n_head=n_head, d_model=d_model, d_head=d_head)
    assert out.shape == (B, S, d_model)
    assert out.dtype == jnp.float32
    err = float(jnp.max(jnp.abs(out - ref)))
    assert jnp.allclose(out, ref, atol=atol, rtol=rtol), err


if __name__ == "__main__":
    key = jax.random.PRNGKey(0)
    key1, key2, key3 = jax.random.split(key, 3)

    # f32 MXU path (exact-semantics check), single head.
    _run_case(key1, B=2, S=8, n_head=1, d_model=128, d_head=64)
    # Multi-head config (exercises the block-diagonal Gram masking path).
    _run_case(key2, B=2, S=8, n_head=2, d_model=128, d_head=32)
    # bf16 MXU inputs with f32 accumulation (recommended on v6e/v7x).
    _run_case(key3, B=2, S=8, n_head=1, d_model=128, d_head=64,
              matmul_dtype=jnp.bfloat16, atol=0.15, rtol=0.05)

    print("KERNEL_OK")
</pallas_src>

<mosaic_0001>
module attributes {stable_mosaic.version = 11 : i64} {
  func.func @_gram_kernel(%arg0: i32, %arg1: i32, %arg2: memref<1x8x128xf32, #tpu.memory_space<vmem>>, %arg3: memref<128x128xf32, #tpu.memory_space<vmem>>, %arg4: memref<128x128xf32, #tpu.memory_space<vmem>>, %arg5: memref<1x128x128xf32, #tpu.memory_space<vmem>>, %arg6: memref<128x128xf32, #tpu.memory_space<vmem>>) attributes {dimension_semantics = [#tpu.dimension_semantics<parallel>, #tpu.dimension_semantics<arbitrary>], iteration_bounds = array<i64: 2, 1>, scalar_prefetch = 0 : i64, scratch_operands = 1 : i64, tpu.core_type = #tpu.core_type<tc>, window_params = [{transform_indices = @transform_0, window_bounds = array<i64: 1, 8, 128>}, {pipeline_mode = #tpu.pipeline_mode<synchronous>, transform_indices = @transform_1, window_bounds = array<i64: 128, 128>}, {pipeline_mode = #tpu.pipeline_mode<synchronous>, transform_indices = @transform_2, window_bounds = array<i64: 128, 128>}, {transform_indices = @transform_3, window_bounds = array<i64: 1, 128, 128>}]} {
    %c0_i32 = arith.constant 0 : i32
    %0 = arith.cmpi eq, %arg1, %c0_i32 : i32
    %1 = arith.extui %0 : i1 to i32
    %c0_i32_0 = arith.constant 0 : i32
    %2 = arith.cmpi ne, %1, %c0_i32_0 : i32
    scf.if %2 {
      %cst_12 = arith.constant 0.000000e+00 : f32
      %14 = vector.broadcast %cst_12 : f32 to vector<128x128xf32>
      %c0_13 = arith.constant 0 : index
      %c0_14 = arith.constant 0 : index
      %15 = vector.load %arg6[%c0_13, %c0_14] : memref<128x128xf32, #tpu.memory_space<vmem>>, vector<128x128xf32>
      tpu.vector_store %arg6[%c0_13, %c0_14], %14 {strides = array<i32>} : memref<128x128xf32, #tpu.memory_space<vmem>>, vector<128x128xf32>,
    } else {
    }
    %c0 = arith.constant 0 : index
    %c0_1 = arith.constant 0 : index
    %c0_2 = arith.constant 0 : index
    %3 = vector.load %arg2[%c0, %c0_1, %c0_2] : memref<1x8x128xf32, #tpu.memory_space<vmem>>, vector<1x8x128xf32>
    %4 = vector.shape_cast %3 : vector<1x8x128xf32> to vector<8x128xf32>
    %c0_3 = arith.constant 0 : index
    %c0_4 = arith.constant 0 : index
    %5 = vector.load %arg3[%c0_3, %c0_4] : memref<128x128xf32, #tpu.memory_space<vmem>>, vector<128x128xf32>
    %cst = arith.constant dense<0.000000e+00> : vector<8x128xf32>
    %6 = tpu.matmul %4, %5, %cst {dimension_numbers = #tpu.dot_dimension_numbers<[1], [0], [0], [1], [0, 0, 1, 1], [], []>} : vector<8x128xf32>, vector<128x128xf32>, vector<8x128xf32> -> vector<8x128xf32>
    %c0_5 = arith.constant 0 : index
    %c0_6 = arith.constant 0 : index
    %7 = vector.load %arg6[%c0_5, %c0_6] : memref<128x128xf32, #tpu.memory_space<vmem>>, vector<128x128xf32>
    %cst_7 = arith.constant dense<0.000000e+00> : vector<128x128xf32>
    %8 = tpu.matmul %6, %6, %cst_7 {dimension_numbers = #tpu.dot_dimension_numbers<[0], [0], [1], [1], [0, 1, 1, 1], [], []>} : vector<8x128xf32>, vector<8x128xf32>, vector<128x128xf32> -> vector<128x128xf32>
    %9 = arith.addf %7, %8 : vector<128x128xf32>
    %c0_8 = arith.constant 0 : index
    %c0_9 = arith.constant 0 : index
    %10 = vector.load %arg6[%c0_8, %c0_9] : memref<128x128xf32, #tpu.memory_space<vmem>>, vector<128x128xf32>
    tpu.vector_store %arg6[%c0_8, %c0_9], %9 {strides = array<i32>} : memref<128x128xf32, #tpu.memory_space<vmem>>, vector<128x128xf32>,
    %c0_i32_10 = arith.constant 0 : i32
    %11 = arith.cmpi eq, %arg1, %c0_i32_10 : i32
    %12 = arith.extui %11 : i1 to i32
    %c0_i32_11 = arith.constant 0 : i32
    %13 = arith.cmpi ne, %12, %c0_i32_11 : i32
    scf.if %13 {
      %c0_12 = arith.constant 0 : index
      %c0_13 = arith.constant 0 : index
      %14 = vector.load %arg6[%c0_12, %c0_13] : memref<128x128xf32, #tpu.memory_space<vmem>>, vector<128x128xf32>
      %c0_14 = arith.constant 0 : index
      %c0_15 = arith.constant 0 : index
      %15 = vector.load %arg4[%c0_14, %c0_15] : memref<128x128xf32, #tpu.memory_space<vmem>>, vector<128x128xf32>
      %16 = arith.mulf %14, %15 : vector<128x128xf32>
      %c0_16 = arith.constant 0 : index
      %c0_17 = arith.constant 0 : index
      %c0_18 = arith.constant 0 : index
      %17 = vector.load %arg5[%c0_16, %c0_17, %c0_18] : memref<1x128x128xf32, #tpu.memory_space<vmem>>, vector<1x128x128xf32>
      %18 = vector.shape_cast %17 : vector<1x128x128xf32> to vector<128x128xf32>
      %19 = vector.shape_cast %16 : vector<128x128xf32> to vector<1x128x128xf32>
      tpu.vector_store %arg5[%c0_16, %c0_17, %c0_18], %19 {strides = array<i32>} : memref<1x128x128xf32, #tpu.memory_space<vmem>>, vector<1x128x128xf32>,
    } else {
    }
    return
  }
  func.func @transform_0(%arg0: i32, %arg1: i32) -> (i32, i32, i32) {
    %c0_i32 = arith.constant 0 : i32
    %c0_i32_0 = arith.constant 0 : i32
    return %arg0, %arg1, %c0_i32 : i32, i32, i32
  }
  func.func @transform_1(%arg0: i32, %arg1: i32) -> (i32, i32) {
    %c0_i32 = arith.constant 0 : i32
    %c0_i32_0 = arith.constant 0 : i32
    %c0_i32_1 = arith.constant 0 : i32
    return %c0_i32, %c0_i32_0 : i32, i32
  }
  func.func @transform_2(%arg0: i32, %arg1: i32) -> (i32, i32) {
    %c0_i32 = arith.constant 0 : i32
    %c0_i32_0 = arith.constant 0 : i32
    %c0_i32_1 = arith.constant 0 : i32
    return %c0_i32, %c0_i32_0 : i32, i32
  }
  func.func @transform_3(%arg0: i32, %arg1: i32) -> (i32, i32, i32) {
    %c0_i32 = arith.constant 0 : i32
    %c0_i32_0 = arith.constant 0 : i32
    %c0_i32_1 = arith.constant 0 : i32
    return %arg0, %c0_i32, %c0_i32_0 : i32, i32, i32
  }
}

module attributes {stable_mosaic.version = 11 : i64} {
  func.func @_gram_kernel(%arg0: i32, %arg1: i32, %arg2: memref<1x8x128xf32, #tpu.memory_space<vmem>>, %arg3: memref<128x128xf32, #tpu.memory_space<vmem>>, %arg4: memref<128x128xf32, #tpu.memory_space<vmem>>, %arg5: memref<1x128x128xf32, #tpu.memory_space<vmem>>, %arg6: memref<128x128xf32, #tpu.memory_space<vmem>>) attributes {dimension_semantics = [#tpu.dimension_semantics<parallel>, #tpu.dimension_semantics<arbitrary>], iteration_bounds = array<i64: 2, 1>, scalar_prefetch = 0 : i64, scratch_operands = 1 : i64, tpu.core_type = #tpu.core_type<tc>, window_params = [{transform_indices = @transform_0, window_bounds = array<i64: 1, 8, 128>}, {pipeline_mode = #tpu.pipeline_mode<synchronous>, transform_indices = @transform_1, window_bounds = array<i64: 128, 128>}, {pipeline_mode = #tpu.pipeline_mode<synchronous>, transform_indices = @transform_2, window_bounds = array<i64: 128, 128>}, {transform_indices = @transform_3, window_bounds = array<i64: 1, 128, 128>}]} {
    %c0_i32 = arith.constant 0 : i32
    %0 = arith.cmpi eq, %arg1, %c0_i32 : i32
    %1 = arith.extui %0 : i1 to i32
    %c0_i32_0 = arith.constant 0 : i32
    %2 = arith.cmpi ne, %1, %c0_i32_0 : i32
    scf.if %2 {
      %cst_12 = arith.constant 0.000000e+00 : f32
      %14 = vector.broadcast %cst_12 : f32 to vector<128x128xf32>
      %c0_13 = arith.constant 0 : index
      %c0_14 = arith.constant 0 : index
      %15 = vector.load %arg6[%c0_13, %c0_14] : memref<128x128xf32, #tpu.memory_space<vmem>>, vector<128x128xf32>
      tpu.vector_store %arg6[%c0_13, %c0_14], %14 {strides = array<i32>} : memref<128x128xf32, #tpu.memory_space<vmem>>, vector<128x128xf32>,
    } else {
    }
    %c0 = arith.constant 0 : index
    %c0_1 = arith.constant 0 : index
    %c0_2 = arith.constant 0 : index
    %3 = vector.load %arg2[%c0, %c0_1, %c0_2] : memref<1x8x128xf32, #tpu.memory_space<vmem>>, vector<1x8x128xf32>
    %4 = vector.shape_cast %3 : vector<1x8x128xf32> to vector<8x128xf32>
    %c0_3 = arith.constant 0 : index
    %c0_4 = arith.constant 0 : index
    %5 = vector.load %arg3[%c0_3, %c0_4] : memref<128x128xf32, #tpu.memory_space<vmem>>, vector<128x128xf32>
    %cst = arith.constant dense<0.000000e+00> : vector<8x128xf32>
    %6 = tpu.matmul %4, %5, %cst {dimension_numbers = #tpu.dot_dimension_numbers<[1], [0], [0], [1], [0, 0, 1, 1], [], []>} : vector<8x128xf32>, vector<128x128xf32>, vector<8x128xf32> -> vector<8x128xf32>
    %c0_5 = arith.constant 0 : index
    %c0_6 = arith.constant 0 : index
    %7 = vector.load %arg6[%c0_5, %c0_6] : memref<128x128xf32, #tpu.memory_space<vmem>>, vector<128x128xf32>
    %cst_7 = arith.constant dense<0.000000e+00> : vector<128x128xf32>
    %8 = tpu.matmul %6, %6, %cst_7 {dimension_numbers = #tpu.dot_dimension_numbers<[0], [0], [1], [1], [0, 1, 1, 1], [], []>} : vector<8x128xf32>, vector<8x128xf32>, vector<128x128xf32> -> vector<128x128xf32>
    %9 = arith.addf %7, %8 : vector<128x128xf32>
    %c0_8 = arith.constant 0 : index
    %c0_9 = arith.constant 0 : index
    %10 = vector.load %arg6[%c0_8, %c0_9] : memref<128x128xf32, #tpu.memory_space<vmem>>, vector<128x128xf32>
    tpu.vector_store %arg6[%c0_8, %c0_9], %9 {strides = array<i32>} : memref<128x128xf32, #tpu.memory_space<vmem>>, vector<128x128xf32>,
    %c0_i32_10 = arith.constant 0 : i32
    %11 = arith.cmpi eq, %arg1, %c0_i32_10 : i32
    %12 = arith.extui %11 : i1 to i32
    %c0_i32_11 = arith.constant 0 : i32
    %13 = arith.cmpi ne, %12, %c0_i32_11 : i32
    scf.if %13 {
      %c0_12 = arith.constant 0 : index
      %c0_13 = arith.constant 0 : index
      %14 = vector.load %arg6[%c0_12, %c0_13] : memref<128x128xf32, #tpu.memory_space<vmem>>, vector<128x128xf32>
      %c0_14 = arith.constant 0 : index
      %c0_15 = arith.constant 0 : index
      %15 = vector.load %arg4[%c0_14, %c0_15] : memref<128x128xf32, #tpu.memory_space<vmem>>, vector<128x128xf32>
      %16 = arith.mulf %14, %15 : vector<128x128xf32>
      %c0_16 = arith.constant 0 : index
      %c0_17 = arith.constant 0 : index
      %c0_18 = arith.constant 0 : index
      %17 = vector.load %arg5[%c0_16, %c0_17, %c0_18] : memref<1x128x128xf32, #tpu.memory_space<vmem>>, vector<1x128x128xf32>
      %18 = vector.shape_cast %17 : vector<1x128x128xf32> to vector<128x128xf32>
      %19 = vector.shape_cast %16 : vector<128x128xf32> to vector<1x128x128xf32>
      tpu.vector_store %arg5[%c0_16, %c0_17, %c0_18], %19 {strides = array<i32>} : memref<1x128x128xf32, #tpu.memory_space<vmem>>, vector<1x128x128xf32>,
    } else {
    }
    return
  }
  func.func @transform_0(%arg0: i32, %arg1: i32) -> (i32, i32, i32) {
    %c0_i32 = arith.constant 0 : i32
    %c0_i32_0 = arith.constant 0 : i32
    return %arg0, %arg1, %c0_i32 : i32, i32, i32
  }
  func.func @transform_1(%arg0: i32, %arg1: i32) -> (i32, i32) {
    %c0_i32 = arith.constant 0 : i32
    %c0_i32_0 = arith.constant 0 : i32
    %c0_i32_1 = arith.constant 0 : i32
    return %c0_i32, %c0_i32_0 : i32, i32
  }
  func.func @transform_2(%arg0: i32, %arg1: i32) -> (i32, i32) {
    %c0_i32 = arith.constant 0 : i32
    %c0_i32_0 = arith.constant 0 : i32
    %c0_i32_1 = arith.constant 0 : i32
    return %c0_i32, %c0_i32_0 : i32, i32
  }
  func.func @transform_3(%arg0: i32, %arg1: i32) -> (i32, i32, i32) {
    %c0_i32 = arith.constant 0 : i32
    %c0_i32_0 = arith.constant 0 : i32
    %c0_i32_1 = arith.constant 0 : i32
    return %arg0, %c0_i32, %c0_i32_0 : i32, i32, i32
  }
}

</mosaic_0001>

<llo_original>
// kernel: tpu_custom_call.1
$region0: #{tpu_custom_call.1}
  #allocation0 [shape = 'u32[]', space=smem, size = 0x4, offset = 0x4, fixed_abs, tag = 'smem constant byte address 0x4 - core index']
  #allocation1 [shape = 'u32[72,128]{1,0:T(1,128)}', space=vmem, size = 0x9000, scoped, tag = 'internal scratch']
  #allocation2 [shape = 'f32[128,128]{1,0:T(8,128)}', space=vmem, size = 0x10000, scoped, tag = 'scratch operand']
  %s0 = inlined_call_operand.hbm [shape: f32[2,8,128], index: 0, kind: input, shape index: {}]
  %s1 = inlined_call_operand.hbm [shape: f32[128,128], index: 1, kind: input, shape index: {}]
  %s2 = inlined_call_operand.hbm [shape: f32[128,128], index: 2, kind: input, shape index: {}]
  %s3 = inlined_call_operand.hbm [shape: f32[2,128,128], index: 3, kind: output, shape index: {}]
  %s4 = sld [smem:[#allocation0]]
  $region65: #{tpu_custom_call.1} parent=0
    _
  %s6 = ssub.s32 1, %s4
  %s7 = scalar_select 0, %s6, %s4
  $region1: #{tpu_custom_call.1} parent=0
    #allocation3 [shape = 'u8[8192]{0}', space=vmem, size = 0x2000, scoped, tag = 'input window, operand 0']
    #allocation4 [shape = 's32[2]{0}', space=sflag, size = 0x8, scoped, tag = 'scoped memory for tpu_custom_call.1']
    #allocation5 [shape = 's32[2]{0}', space=sflag, size = 0x8, scoped, tag = 'scoped memory for tpu_custom_call.1']
    #allocation6 [shape = 'u8[65536]{0}', space=vmem, size = 0x10000, scoped, tag = 'input window, operand 1, single buffered']
    #allocation7 [shape = 's32[1]{0}', space=sflag, size = 0x4, scoped, tag = 'scoped memory for tpu_custom_call.1']
    #allocation8 [shape = 'u8[65536]{0}', space=vmem, size = 0x10000, scoped, tag = 'input window, operand 2, single buffered']
    #allocation9 [shape = 'u8[131072]{0}', space=vmem, size = 0x20000, scoped, tag = 'output window, operand 0']
    %8 = vsyncpa [#allocation4], 0
    %s9 = scalar_lea.sflag [#allocation4], 1
    %10 = vsyncpa %s9, 0
    %11 = vsyncpa [#allocation7], 0
    %12 = vsyncpa [#allocation5], 0
    %s13 = scalar_lea.sflag [#allocation5], 1
    %14 = vsyncpa %s13, 0
    loop: start=0, step=1, limit=4
    $region2: #{tpu_custom_call.1} parent=1 // loop_pre_header
      _
    $region3: #{tpu_custom_call.1} parent=1 // loop_header
      %s16 = sphi 0, %s20
      %p17 = scmp.ge.s32.totalorder %s16, 4
      %s23 = sphi 0, %s35
      %s24 = sphi 0, %s31
      %s25 = sphi 0, %s23
      %s26 = sphi 0, %s24
      %s27 = sphi 0, %s25
      %s28 = sphi 0, %s26
      %s40 = sphi 0, %s42
      %s43 = sphi 0, %s40
      %s44 = sphi 0, %s43
      %s60 = sphi 0, %s44
      %s64 = sphi 0, %s64
      %s66 = sphi 0, %s64
      %s67 = sphi 0, %s66
      %s81 = sphi 0, %s67
      %s85 = sphi 0, %s85
      %s87 = sphi 0, %s85
      %s88 = sphi 0, %s87
      %s102 = sphi 0, %s88
      %s108 = sphi 0, %s110
      %s111 = sphi 0, %s108
      %s112 = sphi 0, %s111
      %s128 = sphi 0, %s112
    $region4: #{tpu_custom_call.1} parent=1 // loop_header_branch
      %19 = sbr.rel (%p17) target = $region8
    $region5: #{tpu_custom_call.1} parent=1 // loop_body
      %s21 = ssub.s32 %s16, 1
      %s22 = ssub.s32 %s16, 2
      %s29 = sadd.s32 1, %s24
      %p30 = scmp.ge.s32.totalorder %s29, 1
      %s31 = scalar_select %p30, 0, %s29
      %s32 = sadd.s32 1, %s23
      %s33 = scalar_select %p30, %s32, %s23
      %p34 = scmp.ge.s32.totalorder %s33, 2
      %s35 = scalar_select %p34, 0, %s33
      %s36 = ssub.s32 %s23, %s35
      %s37 = ssub.s32 %s24, %s31
      %s38 = sor.u32 %s36, %s37
      %p39 = scmp.eq.s32.totalorder %s38, 0
      %s41 = sadd.s32 %s40, 1
      %s42 = scalar_select %p39, %s40, %s41
      %p45 = pneg %p39
      %p46 = scmp.eq.s32.totalorder %s16, 1
      %p47 = por %p45, %p46
      %p48 = scmp.ne.s32.totalorder %s40, %s43
      %p49 = scmp.eq.s32.totalorder %s16, 0
      %p50 = por %p48, %p49
      %p51 = scmp.ne.s32.totalorder %s40, %s43
      %p52 = scmp.eq.s32.totalorder %s21, 1
      %p53 = por %p51, %p52
      %p54 = scmp.ne.s32.totalorder %s43, %s44
      %p55 = scmp.eq.s32.totalorder %s21, 0
      %p56 = por %p54, %p55
      %p57 = scmp.ne.s32.totalorder %s43, %s44
      %p58 = scmp.eq.s32.totalorder %s22, 1
      %p59 = por %p57, %p58
      %p61 = scmp.ne.s32.totalorder %s44, %s60
      %p62 = scmp.eq.s32.totalorder %s22, 0
      %p63 = por %p61, %p62
      %s65 = sadd.s32 %s64, 1
      %p68 = scmp.eq.s32.totalorder %s16, 1
      %p69 = scmp.ne.s32.totalorder %s64, %s66
      %p70 = scmp.eq.s32.totalorder %s16, 0
      %p71 = por %p69, %p70
      %p72 = scmp.ne.s32.totalorder %s64, %s66
      %p73 = scmp.eq.s32.totalorder %s21, 1
      %p74 = por %p72, %p73
      %p75 = scmp.ne.s32.totalorder %s66, %s67
      %p76 = scmp.eq.s32.totalorder %s21, 0
      %p77 = por %p75, %p76
      %p78 = scmp.ne.s32.totalorder %s66, %s67
      %p79 = scmp.eq.s32.totalorder %s22, 1
      %p80 = por %p78, %p79
      %p82 = scmp.ne.s32.totalorder %s67, %s81
      %p83 = scmp.eq.s32.totalorder %s22, 0
      %p84 = por %p82, %p83
      %s86 = sadd.s32 %s85, 1
      %p89 = scmp.eq.s32.totalorder %s16, 1
      %p90 = scmp.ne.s32.totalorder %s85, %s87
      %p91 = scmp.eq.s32.totalorder %s16, 0
      %p92 = por %p90, %p91
      %p93 = scmp.ne.s32.totalorder %s85, %s87
      %p94 = scmp.eq.s32.totalorder %s21, 1
      %p95 = por %p93, %p94
      %p96 = scmp.ne.s32.totalorder %s87, %s88
      %p97 = scmp.eq.s32.totalorder %s21, 0
      %p98 = por %p96, %p97
      %p99 = scmp.ne.s32.totalorder %s87, %s88
      %p100 = scmp.eq.s32.totalorder %s22, 1
      %p101 = por %p99, %p100
      %p103 = scmp.ne.s32.totalorder %s88, %s102
      %p104 = scmp.eq.s32.totalorder %s22, 0
      %p105 = por %p103, %p104
      %s106 = ssub.s32 %s23, %s35
      %p107 = scmp.eq.s32.totalorder %s106, 0
      %s109 = sadd.s32 %s108, 1
      %s110 = scalar_select %p107, %s108, %s109
      %p113 = pneg %p107
      %p114 = scmp.eq.s32.totalorder %s16, 1
      %p115 = por %p113, %p114
      %p116 = scmp.ne.s32.totalorder %s108, %s111
      %p117 = scmp.eq.s32.totalorder %s16, 0
      %p118 = por %p116, %p117
      %p119 = scmp.ne.s32.totalorder %s108, %s111
      %p120 = scmp.eq.s32.totalorder %s21, 1
      %p121 = por %p119, %p120
      %p122 = scmp.ne.s32.totalorder %s111, %s112
      %p123 = scmp.eq.s32.totalorder %s21, 0
      %p124 = por %p122, %p123
      %p125 = scmp.ne.s32.totalorder %s111, %s112
      %p126 = scmp.eq.s32.totalorder %s22, 1
      %p127 = por %p125, %p126
      %p129 = scmp.ne.s32.totalorder %s112, %s128
      %p130 = scmp.eq.s32.totalorder %s22, 0
      %p131 = por %p129, %p130
      %p132 = scmp.le.s32.totalorder 1, %s16
      %p133 = scmp.lt.s32.totalorder %s16, 3
      %p134 = pnand %p132, %p133
      %p135 = pneg %p134
      // Predicated region
      $region9: #{tpu_custom_call.1} parent=5 // pred_check
        _
      $region10: #{tpu_custom_call.1} parent=5 // pred_check_branch
        %137 = sbr.rel (%p134) target = $region12
      $region11: #{tpu_custom_call.1} parent=5 // pred_region
        %s138 = ssub.s32 %s16, 1
        // Predicated region
        $region13: #{tpu_custom_call.1} parent=11 // pred_check
          %p139 = pneg %p77
        $region14: #{tpu_custom_call.1} parent=11 // pred_check_branch
          %141 = sbr.rel (%p139) target = $region16
        $region15: #{tpu_custom_call.1} parent=11 // pred_region
          %143 = vsyncadd [#allocation7], 0
          %s144 = sshll.u32 %s1, 4
          %s145 = int_to_ptr.hbm [resolvable:$true] %s144
          %s146 = sshll.u32 [#allocation6], 4
          %s147 = int_to_ptr.vmem [resolvable:$true] %s146
          %152 = dma.hbm_to_vmem [thread:$0]  %s145, 2048, %s147, [#allocation7], 128, 128, 8
        $region16: #{tpu_custom_call.1} parent=11 // pred_fallthru
          _
        // Predicated region
        $region17: #{tpu_custom_call.1} parent=11 // pred_check
          %p153 = pneg %p98
        $region18: #{tpu_custom_call.1} parent=11 // pred_check_branch
          %155 = sbr.rel (%p153) target = $region20
        $region19: #{tpu_custom_call.1} parent=11 // pred_region
          %157 = vsyncadd [#allocation7], 0
          %s158 = sshll.u32 %s2, 4
          %s159 = int_to_ptr.hbm [resolvable:$true] %s158
          %s160 = sshll.u32 [#allocation8], 4
          %s161 = int_to_ptr.vmem [resolvable:$true] %s160
          %166 = dma.hbm_to_vmem [thread:$0]  %s159, 2048, %s161, [#allocation7], 128, 128, 8
        $region20: #{tpu_custom_call.1} parent=11 // pred_fallthru
          _
      $region12: #{tpu_custom_call.1} parent=5 // pred_fallthru
        _
      %p167 = scmp.lt.s32.totalorder %s16, 2
      // Predicated region
      $region21: #{tpu_custom_call.1} parent=5 // pred_check
        %p168 = pneg %p167
      $region22: #{tpu_custom_call.1} parent=5 // pred_check_branch
        %170 = sbr.rel (%p168) target = $region24
      $region23: #{tpu_custom_call.1} parent=5 // pred_region
        // Predicated region
        $region25: #{tpu_custom_call.1} parent=23 // pred_check
          %p171 = pneg %p50
        $region26: #{tpu_custom_call.1} parent=23 // pred_check_branch
          %173 = sbr.rel (%p171) target = $region28
        $region27: #{tpu_custom_call.1} parent=23 // pred_region
          %s174 = sand.u32 %s40, 1
          %s175 = scalar_lea.sflag [#allocation4], %s174
          %s176 = sand.u32 %s40, 1
          %s177 = smul.addr %s176, 8
          %s178 = scalar_lea.vmem [#allocation3], %s177
          %180 = vsyncadd %s175, 0
          %s181 = sadd.s32 %s24, %s23
          %s182 = smul.addr %s181, 8
          %s183 = scalar_lea.hbm %s0, %s182
          %s185 = sshll.u32 %s183, 4
          %s186 = int_to_ptr.hbm [resolvable:$true] %s185
          %s187 = sshll.u32 %s178, 4
          %s188 = int_to_ptr.vmem [resolvable:$true] %s187
          %190 = dma.hbm_to_vmem [thread:$0]  %s186, 128, %s188, %s175
        $region28: #{tpu_custom_call.1} parent=23 // pred_fallthru
          _
      $region24: #{tpu_custom_call.1} parent=5 // pred_fallthru
        _
      %p191 = scmp.le.s32.totalorder 1, %s16
      %p192 = scmp.lt.s32.totalorder %s16, 3
      %p193 = pnand %p191, %p192
      %p194 = pneg %p193
      // Predicated region
      $region29: #{tpu_custom_call.1} parent=5 // pred_check
        _
      $region30: #{tpu_custom_call.1} parent=5 // pred_check_branch
        %196 = sbr.rel (%p193) target = $region32
      $region31: #{tpu_custom_call.1} parent=5 // pred_region
        %s197 = ssub.s32 %s16, 1
        %s198 = sand.u32 %s43, 1
        %s199 = scalar_lea.sflag [#allocation4], %s198
        %s200 = sand.u32 %s43, 1
        %s201 = smul.addr %s200, 8
        %s202 = scalar_lea.vmem [#allocation3], %s201
        // Predicated region
        $region33: #{tpu_custom_call.1} parent=31 // pred_check
          %p203 = pneg %p56
        $region34: #{tpu_custom_call.1} parent=31 // pred_check_branch
          %205 = sbr.rel (%p203) target = $region36
        $region35: #{tpu_custom_call.1} parent=31 // pred_region
          %207 = dma.done %s199, 128
        $region36: #{tpu_custom_call.1} parent=31 // pred_fallthru
          _
        // Predicated region
        $region37: #{tpu_custom_call.1} parent=31 // pred_check
          %p208 = pneg %p77
        $region38: #{tpu_custom_call.1} parent=31 // pred_check_branch
          %210 = sbr.rel (%p208) target = $region40
        $region39: #{tpu_custom_call.1} parent=31 // pred_region
          %212 = dma.done [#allocation7], 2048
        $region40: #{tpu_custom_call.1} parent=31 // pred_fallthru
          _
        // Predicated region
        $region41: #{tpu_custom_call.1} parent=31 // pred_check
          %p213 = pneg %p98
        $region42: #{tpu_custom_call.1} parent=31 // pred_check_branch
          %215 = sbr.rel (%p213) target = $region44
        $region43: #{tpu_custom_call.1} parent=31 // pred_region
          %217 = dma.done [#allocation7], 2048
        $region44: #{tpu_custom_call.1} parent=31 // pred_fallthru
          _
        %s218 = sand.u32 %s43, 1
        %s219 = scalar_lea.sflag [#allocation4], %s218
        %s220 = sand.u32 %s43, 1
        %s221 = smul.addr %s220, 8
        %s222 = scalar_lea.vmem [#allocation3], %s221
        %p223 = pneg %p56
        %p224 = pneg %p53
        %p225 = pneg %p77
        %p226 = pneg %p74
        %p227 = pneg %p98
        %p228 = pneg %p95
        %p229 = pneg %p124
        %p230 = pneg %p121
        %s231 = sand.u32 %s111, 1
        %s232 = scalar_lea.sflag [#allocation5], %s231
        %s233 = sand.u32 %s111, 1
        %s234 = smul.addr %s233, 128
        %s235 = scalar_lea.vmem [#allocation9], %s234
        %p236 = scmp.eq.s32.totalorder %s26, 0
        // Predicated region
        $region45: #{tpu_custom_call.1} parent=31 // pred_check
          %p237 = pneg %p236
        $region46: #{tpu_custom_call.1} parent=31 // pred_check_branch
          %239 = sbr.rel (%p237) target = $region48
        $region47: #{tpu_custom_call.1} parent=31 // pred_region
          %240 = vst [vmem:[#allocation2] sm:$0xff] 0.0
          %241 = vst [vmem:[#allocation2 + $0x8] sm:$0xff] 0.0
          %242 = vst [vmem:[#allocation2 + $0x10] sm:$0xff] 0.0
          %243 = vst [vmem:[#allocation2 + $0x18] sm:$0xff] 0.0
          %244 = vst [vmem:[#allocation2 + $0x20] sm:$0xff] 0.0
          %245 = vst [vmem:[#allocation2 + $0x28] sm:$0xff] 0.0
          %246 = vst [vmem:[#allocation2 + $0x30] sm:$0xff] 0.0
          %247 = vst [vmem:[#allocation2 + $0x38] sm:$0xff] 0.0
          %248 = vst [vmem:[#allocation2 + $0x40] sm:$0xff] 0.0
          %249 = vst [vmem:[#allocation2 + $0x48] sm:$0xff] 0.0
          %250 = vst [vmem:[#allocation2 + $0x50] sm:$0xff] 0.0
          %251 = vst [vmem:[#allocation2 + $0x58] sm:$0xff] 0.0
          %252 = vst [vmem:[#allocation2 + $0x60] sm:$0xff] 0.0
          %253 = vst [vmem:[#allocation2 + $0x68] sm:$0xff] 0.0
          %254 = vst [vmem:[#allocation2 + $0x70] sm:$0xff] 0.0
          %255 = vst [vmem:[#allocation2 + $0x78] sm:$0xff] 0.0
        $region48: #{tpu_custom_call.1} parent=31 // pred_fallthru
          _
        %v256 = vld [vmem:[%s202] sm:$0xff]
        %v257 = vld [vmem:[#allocation6] sm:$0xff]
        %v258 = vld [vmem:[#allocation6 + $0x8] sm:$0xff]
        %v259 = vld [vmem:[#allocation6 + $0x10] sm:$0xff]
        %v260 = vld [vmem:[#allocation6 + $0x18] sm:$0xff]
        %v261 = vld [vmem:[#allocation6 + $0x20] sm:$0xff]
        %v262 = vld [vmem:[#allocation6 + $0x28] sm:$0xff]
        %v263 = vld [vmem:[#allocation6 + $0x30] sm:$0xff]
        %v264 = vld [vmem:[#allocation6 + $0x38] sm:$0xff]
        %v265 = vld [vmem:[#allocation6 + $0x40] sm:$0xff]
        %v266 = vld [vmem:[#allocation6 + $0x48] sm:$0xff]
        %v267 = vld [vmem:[#allocation6 + $0x50] sm:$0xff]
        %v268 = vld [vmem:[#allocation6 + $0x58] sm:$0xff]
        %v269 = vld [vmem:[#allocation6 + $0x60] sm:$0xff]
        %v270 = vld [vmem:[#allocation6 + $0x68] sm:$0xff]
        %v271 = vld [vmem:[#allocation6 + $0x70] sm:$0xff]
        %v272 = vld [vmem:[#allocation6 + $0x78] sm:$0xff]
        %273 = vmatpush.msra.mxu0 %v272
        %274 = vmatpush.msra.mxu0 %v271
        %275 = vmatpush.msra.mxu0 %v270
        %276 = vmatpush.msra.mxu0 %v269
        %277 = vmatpush.msra.mxu0 %v268
        %278 = vmatpush.msra.mxu0 %v267
        %279 = vmatpush.msra.mxu0 %v266
        %280 = vmatpush.msra.mxu0 %v265
        %281 = vmatpush.msra.mxu0 %v264
        %282 = vmatpush.msra.mxu0 %v263
        %283 = vmatpush.msra.mxu0 %v262
        %284 = vmatpush.msra.mxu0 %v261
        %285 = vmatpush.msra.mxu0 %v260
        %286 = vmatpush.msra.mxu0 %v259
        %287 = vmatpush.msra.mxu0 %v258
        %288 = vmatpush.msra.mxu0 %v257
        %289 = vmatmul.f32.gmra.mxu0 %v256
        %v290 = vpop.f32.mrf.mxu0
        %v291 = vadd.f32 0.0, %v290
        %292 = vdwg.mxu0
        %v293 = vld [vmem:[#allocation2] sm:$0xff]
        %v294 = vld [vmem:[#allocation2 + $0x8] sm:$0xff]
        %v295 = vld [vmem:[#allocation2 + $0x10] sm:$0xff]
        %v296 = vld [vmem:[#allocation2 + $0x18] sm:$0xff]
        %v297 = vld [vmem:[#allocation2 + $0x20] sm:$0xff]
        %v298 = vld [vmem:[#allocation2 + $0x28] sm:$0xff]
        %v299 = vld [vmem:[#allocation2 + $0x30] sm:$0xff]
        %v300 = vld [vmem:[#allocation2 + $0x38] sm:$0xff]
        %v301 = vld [vmem:[#allocation2 + $0x40] sm:$0xff]
        %v302 = vld [vmem:[#allocation2 + $0x48] sm:$0xff]
        %v303 = vld [vmem:[#allocation2 + $0x50] sm:$0xff]
        %v304 = vld [vmem:[#allocation2 + $0x58] sm:$0xff]
        %v305 = vld [vmem:[#allocation2 + $0x60] sm:$0xff]
        %v306 = vld [vmem:[#allocation2 + $0x68] sm:$0xff]
        %v307 = vld [vmem:[#allocation2 + $0x70] sm:$0xff]
        %v308 = vld [vmem:[#allocation2 + $0x78] sm:$0xff]
        %309 = vxpose.xlu0.b32.start [1/16] %v291, 128
        %310 = vxpose.xlu0.b32.cont [2/16] 0.0, 128
        %311 = vxpose.xlu0.b32.cont [3/16] 0.0, 128
        %312 = vxpose.xlu0.b32.cont [4/16] 0.0, 128
        %313 = vxpose.xlu0.b32.cont [5/16] 0.0, 128
        %314 = vxpose.xlu0.b32.cont [6/16] 0.0, 128
        %315 = vxpose.xlu0.b32.cont [7/16] 0.0, 128
        %316 = vxpose.xlu0.b32.cont [8/16] 0.0, 128
        %317 = vxpose.xlu0.b32.cont [9/16] 0.0, 128
        %318 = vxpose.xlu0.b32.cont [10/16] 0.0, 128
        %319 = vxpose.xlu0.b32.cont [11/16] 0.0, 128
        %320 = vxpose.xlu0.b32.cont [12/16] 0.0, 128
        %321 = vxpose.xlu0.b32.cont [13/16] 0.0, 128
        %322 = vxpose.xlu0.b32.cont [14/16] 0.0, 128
        %323 = vxpose.xlu0.b32.cont [15/16] 0.0, 128
        %324 = vxpose.xlu0.b32.end [16/16] 0.0, 128
        %v325 = vpop.trf.xlu0
        %v326 = vpop.trf.xlu0
        %v327 = vpop.trf.xlu0
        %v328 = vpop.trf.xlu0
        %v329 = vpop.trf.xlu0
        %v330 = vpop.trf.xlu0
        %v331 = vpop.trf.xlu0
        %v332 = vpop.trf.xlu0
        %v333 = vpop.trf.xlu0
        %v334 = vpop.trf.xlu0
        %v335 = vpop.trf.xlu0
        %v336 = vpop.trf.xlu0
        %v337 = vpop.trf.xlu0
        %v338 = vpop.trf.xlu0
        %v339 = vpop.trf.xlu0
        %v340 = vpop.trf.xlu0
        %vm341 = vcmask 64512
        %v343 = vsel %vm341, %v325, 0
        %v346 = vsel %vm341, %v326, 0
        %v349 = vsel %vm341, %v327, 0
        %v352 = vsel %vm341, %v328, 0
        %v355 = vsel %vm341, %v329, 0
        %v358 = vsel %vm341, %v330, 0
        %v361 = vsel %vm341, %v331, 0
        %v364 = vsel %vm341, %v332, 0
        %v367 = vsel %vm341, %v333, 0
        %v370 = vsel %vm341, %v334, 0
        %v373 = vsel %vm341, %v335, 0
        %v376 = vsel %vm341, %v336, 0
        %v379 = vsel %vm341, %v337, 0
        %v382 = vsel %vm341, %v338, 0
        %v385 = vsel %vm341, %v339, 0
        %v388 = vsel %vm341, %v340, 0
        %390 = vmatpush.msra.mxu0 0.0
        %391 = vmatpush.msra.mxu0 0.0
        %392 = vmatpush.msra.mxu0 0.0
        %393 = vmatpush.msra.mxu0 0.0
        %394 = vmatpush.msra.mxu0 0.0
        %395 = vmatpush.msra.mxu0 0.0
        %396 = vmatpush.msra.mxu0 0.0
        %397 = vmatpush.msra.mxu0 0.0
        %398 = vmatpush.msra.mxu0 0.0
        %399 = vmatpush.msra.mxu0 0.0
        %400 = vmatpush.msra.mxu0 0.0
        %401 = vmatpush.msra.mxu0 0.0
        %402 = vmatpush.msra.mxu0 0.0
        %403 = vmatpush.msra.mxu0 0.0
        %404 = vmatpush.msra.mxu0 0.0
        %405 = vmatpush.msra.mxu0 %v291
        %406 = vmatmul.f32.gmra.mxu0 %v343
        %v407 = vpop.f32.mrf.mxu0
        %v408 = vadd.f32 0.0, %v407
        %409 = vmatmul.f32.gmra.mxu0 %v346
        %v410 = vpop.f32.mrf.mxu0
        %v411 = vadd.f32 0.0, %v410
        %412 = vmatmul.f32.gmra.mxu0 %v349
        %v413 = vpop.f32.mrf.mxu0
        %v414 = vadd.f32 0.0, %v413
        %415 = vmatmul.f32.gmra.mxu0 %v352
        %v416 = vpop.f32.mrf.mxu0
        %v417 = vadd.f32 0.0, %v416
        %418 = vmatmul.f32.gmra.mxu0 %v355
        %v419 = vpop.f32.mrf.mxu0
        %v420 = vadd.f32 0.0, %v419
        %421 = vmatmul.f32.gmra.mxu0 %v358
        %v422 = vpop.f32.mrf.mxu0
        %v423 = vadd.f32 0.0, %v422
        %424 = vmatmul.f32.gmra.mxu0 %v361
        %v425 = vpop.f32.mrf.mxu0
        %v426 = vadd.f32 0.0, %v425
        %427 = vmatmul.f32.gmra.mxu0 %v364
        %v428 = vpop.f32.mrf.mxu0
        %v429 = vadd.f32 0.0, %v428
        %430 = vmatmul.f32.gmra.mxu0 %v367
        %v431 = vpop.f32.mrf.mxu0
        %v432 = vadd.f32 0.0, %v431
        %433 = vmatmul.f32.gmra.mxu0 %v370
        %v434 = vpop.f32.mrf.mxu0
        %v435 = vadd.f32 0.0, %v434
        %436 = vmatmul.f32.gmra.mxu0 %v373
        %v437 = vpop.f32.mrf.mxu0
        %v438 = vadd.f32 0.0, %v437
        %439 = vmatmul.f32.gmra.mxu0 %v376
        %v440 = vpop.f32.mrf.mxu0
        %v441 = vadd.f32 0.0, %v440
        %442 = vmatmul.f32.gmra.mxu0 %v379
        %v443 = vpop.f32.mrf.mxu0
        %v444 = vadd.f32 0.0, %v443
        %445 = vmatmul.f32.gmra.mxu0 %v382
        %v446 = vpop.f32.mrf.mxu0
        %v447 = vadd.f32 0.0, %v446
        %448 = vmatmul.f32.gmra.mxu0 %v385
        %v449 = vpop.f32.mrf.mxu0
        %v450 = vadd.f32 0.0, %v449
        %451 = vmatmul.f32.gmra.mxu0 %v388
        %v452 = vpop.f32.mrf.mxu0
        %v453 = vadd.f32 0.0, %v452
        %454 = vdwg.mxu0
        %v455 = vadd.f32 %v293, %v408
        %v456 = vadd.f32 %v294, %v411
        %v457 = vadd.f32 %v295, %v414
        %v458 = vadd.f32 %v296, %v417
        %v459 = vadd.f32 %v297, %v420
        %v460 = vadd.f32 %v298, %v423
        %v461 = vadd.f32 %v299, %v426
        %v462 = vadd.f32 %v300, %v429
        %v463 = vadd.f32 %v301, %v432
        %v464 = vadd.f32 %v302, %v435
        %v465 = vadd.f32 %v303, %v438
        %v466 = vadd.f32 %v304, %v441
        %v467 = vadd.f32 %v305, %v444
        %v468 = vadd.f32 %v306, %v447
        %v469 = vadd.f32 %v307, %v450
        %v470 = vadd.f32 %v308, %v453
        %471 = vst [vmem:[#allocation2] sm:$0xff] %v455
        %472 = vst [vmem:[#allocation2 + $0x8] sm:$0xff] %v456
        %473 = vst [vmem:[#allocation2 + $0x10] sm:$0xff] %v457
        %474 = vst [vmem:[#allocation2 + $0x18] sm:$0xff] %v458
        %475 = vst [vmem:[#allocation2 + $0x20] sm:$0xff] %v459
        %476 = vst [vmem:[#allocation2 + $0x28] sm:$0xff] %v460
        %477 = vst [vmem:[#allocation2 + $0x30] sm:$0xff] %v461
        %478 = vst [vmem:[#allocation2 + $0x38] sm:$0xff] %v462
        %479 = vst [vmem:[#allocation2 + $0x40] sm:$0xff] %v463
        %480 = vst [vmem:[#allocation2 + $0x48] sm:$0xff] %v464
        %481 = vst [vmem:[#allocation2 + $0x50] sm:$0xff] %v465
        %482 = vst [vmem:[#allocation2 + $0x58] sm:$0xff] %v466
        %483 = vst [vmem:[#allocation2 + $0x60] sm:$0xff] %v467
        %484 = vst [vmem:[#allocation2 + $0x68] sm:$0xff] %v468
        %485 = vst [vmem:[#allocation2 + $0x70] sm:$0xff] %v469
        %486 = vst [vmem:[#allocation2 + $0x78] sm:$0xff] %v470
        // Predicated region
        $region49: #{tpu_custom_call.1} parent=31 // pred_check
          %p487 = pneg %p236
        $region50: #{tpu_custom_call.1} parent=31 // pred_check_branch
          %489 = sbr.rel (%p487) target = $region52
        $region51: #{tpu_custom_call.1} parent=31 // pred_region
          %v490 = vld [vmem:[#allocation2] sm:$0xff]
          %v491 = vld [vmem:[#allocation2 + $0x8] sm:$0xff]
          %v492 = vld [vmem:[#allocation2 + $0x10] sm:$0xff]
          %v493 = vld [vmem:[#allocation2 + $0x18] sm:$0xff]
          %v494 = vld [vmem:[#allocation2 + $0x20] sm:$0xff]
          %v495 = vld [vmem:[#allocation2 + $0x28] sm:$0xff]
          %v496 = vld [vmem:[#allocation2 + $0x30] sm:$0xff]
          %v497 = vld [vmem:[#allocation2 + $0x38] sm:$0xff]
          %v498 = vld [vmem:[#allocation2 + $0x40] sm:$0xff]
          %v499 = vld [vmem:[#allocation2 + $0x48] sm:$0xff]
          %v500 = vld [vmem:[#allocation2 + $0x50] sm:$0xff]
          %v501 = vld [vmem:[#allocation2 + $0x58] sm:$0xff]
          %v502 = vld [vmem:[#allocation2 + $0x60] sm:$0xff]
          %v503 = vld [vmem:[#allocation2 + $0x68] sm:$0xff]
          %v504 = vld [vmem:[#allocation2 + $0x70] sm:$0xff]
          %v505 = vld [vmem:[#allocation2 + $0x78] sm:$0xff]
          %v506 = vld [vmem:[#allocation8] sm:$0xff]
          %v507 = vld [vmem:[#allocation8 + $0x8] sm:$0xff]
          %v508 = vld [vmem:[#allocation8 + $0x10] sm:$0xff]
          %v509 = vld [vmem:[#allocation8 + $0x18] sm:$0xff]
          %v510 = vld [vmem:[#allocation8 + $0x20] sm:$0xff]
          %v511 = vld [vmem:[#allocation8 + $0x28] sm:$0xff]
          %v512 = vld [vmem:[#allocation8 + $0x30] sm:$0xff]
          %v513 = vld [vmem:[#allocation8 + $0x38] sm:$0xff]
          %v514 = vld [vmem:[#allocation8 + $0x40] sm:$0xff]
          %v515 = vld [vmem:[#allocation8 + $0x48] sm:$0xff]
          %v516 = vld [vmem:[#allocation8 + $0x50] sm:$0xff]
          %v517 = vld [vmem:[#allocation8 + $0x58] sm:$0xff]
          %v518 = vld [vmem:[#allocation8 + $0x60] sm:$0xff]
          %v519 = vld [vmem:[#allocation8 + $0x68] sm:$0xff]
          %v520 = vld [vmem:[#allocation8 + $0x70] sm:$0xff]
          %v521 = vld [vmem:[#allocation8 + $0x78] sm:$0xff]
          %v522 = vmul.f32 %v490, %v506
          %v523 = vmul.f32 %v491, %v507
          %v524 = vmul.f32 %v492, %v508
          %v525 = vmul.f32 %v493, %v509
          %v526 = vmul.f32 %v494, %v510
          %v527 = vmul.f32 %v495, %v511
          %v528 = vmul.f32 %v496, %v512
          %v529 = vmul.f32 %v497, %v513
          %v530 = vmul.f32 %v498, %v514
          %v531 = vmul.f32 %v499, %v515
          %v532 = vmul.f32 %v500, %v516
          %v533 = vmul.f32 %v501, %v517
          %v534 = vmul.f32 %v502, %v518
          %v535 = vmul.f32 %v503, %v519
          %v536 = vmul.f32 %v504, %v520
          %v537 = vmul.f32 %v505, %v521
          %538 = vst [vmem:[%s235] sm:$0xff] %v522
          %539 = vst [vmem:[%s235 + $0x8] sm:$0xff] %v523
          %540 = vst [vmem:[%s235 + $0x10] sm:$0xff] %v524
          %541 = vst [vmem:[%s235 + $0x18] sm:$0xff] %v525
          %542 = vst [vmem:[%s235 + $0x20] sm:$0xff] %v526
          %543 = vst [vmem:[%s235 + $0x28] sm:$0xff] %v527
          %544 = vst [vmem:[%s235 + $0x30] sm:$0xff] %v528
          %545 = vst [vmem:[%s235 + $0x38] sm:$0xff] %v529
          %546 = vst [vmem:[%s235 + $0x40] sm:$0xff] %v530
          %547 = vst [vmem:[%s235 + $0x48] sm:$0xff] %v531
          %548 = vst [vmem:[%s235 + $0x50] sm:$0xff] %v532
          %549 = vst [vmem:[%s235 + $0x58] sm:$0xff] %v533
          %550 = vst [vmem:[%s235 + $0x60] sm:$0xff] %v534
          %551 = vst [vmem:[%s235 + $0x68] sm:$0xff] %v535
          %552 = vst [vmem:[%s235 + $0x70] sm:$0xff] %v536
          %553 = vst [vmem:[%s235 + $0x78] sm:$0xff] %v537
        $region52: #{tpu_custom_call.1} parent=31 // pred_fallthru
          _
        %s554 = sand.u32 %s111, 1
        %s555 = scalar_lea.sflag [#allocation5], %s554
        %s556 = sand.u32 %s111, 1
        %s557 = smul.addr %s556, 128
        %s558 = scalar_lea.vmem [#allocation9], %s557
        // Predicated region
        $region53: #{tpu_custom_call.1} parent=31 // pred_check
          %p559 = pneg %p121
        $region54: #{tpu_custom_call.1} parent=31 // pred_check_branch
          %561 = sbr.rel (%p559) target = $region56
        $region55: #{tpu_custom_call.1} parent=31 // pred_region
          %563 = vsyncadd %s555, 0
          %s564 = smul.addr %s25, 16
          %s565 = smul.addr %s564, 8
          %s566 = scalar_lea.hbm %s3, %s565
          %s567 = sshll.u32 %s558, 4
          %s568 = int_to_ptr.vmem [resolvable:$true] %s567
          %s569 = sshll.u32 %s566, 4
          %s570 = int_to_ptr.hbm [resolvable:$true] %s569
          %575 = dma.vmem_to_hbm [thread:$0]  %s568, 2048, %s570, %s555, 128, 128, 8
        $region56: #{tpu_custom_call.1} parent=31 // pred_fallthru
          _
      $region32: #{tpu_custom_call.1} parent=5 // pred_fallthru
        _
      %p576 = scmp.le.s32.totalorder 2, %s16
      // Predicated region
      $region57: #{tpu_custom_call.1} parent=5 // pred_check
        %p577 = pneg %p576
      $region58: #{tpu_custom_call.1} parent=5 // pred_check_branch
        %579 = sbr.rel (%p577) target = $region60
      $region59: #{tpu_custom_call.1} parent=5 // pred_region
        %s580 = ssub.s32 %s16, 2
        // Predicated region
        $region61: #{tpu_custom_call.1} parent=59 // pred_check
          %p581 = pneg %p127
        $region62: #{tpu_custom_call.1} parent=59 // pred_check_branch
          %583 = sbr.rel (%p581) target = $region64
        $region63: #{tpu_custom_call.1} parent=59 // pred_region
          %s584 = sand.u32 %s112, 1
          %s585 = scalar_lea.sflag [#allocation5], %s584
          %s586 = sand.u32 %s112, 1
          %s587 = smul.addr %s586, 128
          %s588 = scalar_lea.vmem [#allocation9], %s587
          %590 = dma.done %s585, 2048
        $region64: #{tpu_custom_call.1} parent=59 // pred_fallthru
          _
      $region60: #{tpu_custom_call.1} parent=5 // pred_fallthru
        _
    $region6: #{tpu_custom_call.1} parent=1 // loop_footer
      %s20 = sadd.s32 1, %s16
    $region7: #{tpu_custom_call.1} parent=1 // loop_footer_branch
      %15 = sbr.rel target = $region3
    $region8: #{tpu_custom_call.1} parent=1 // loop_exit
      _
    %591 = vsyncpa [#allocation4], 1
    %s592 = scalar_lea.sflag [#allocation4], 1
    %593 = vsyncpa %s592, 1
    %594 = vsyncpa [#allocation7], 1
    %595 = vsyncpa [#allocation5], 1
    %s596 = scalar_lea.sflag [#allocation5], 1
    %597 = vsyncpa %s596, 1

// kernel: tpu_custom_call.1
$region0: #{tpu_custom_call.1}
  #allocation0 [shape = 'u32[]', space=smem, size = 0x4, offset = 0x4, fixed_abs, tag = 'smem constant byte address 0x4 - core index']
  #allocation1 [shape = 'u32[72,128]{1,0:T(1,128)}', space=vmem, size = 0x9000, scoped, tag = 'internal scratch']
  #allocation2 [shape = 'f32[128,128]{1,0:T(8,128)}', space=vmem, size = 0x10000, scoped, tag = 'scratch operand']
  %s0 = inlined_call_operand.hbm [shape: f32[2,8,128], index: 0, kind: input, shape index: {}]
  %s1 = inlined_call_operand.hbm [shape: f32[128,128], index: 1, kind: input, shape index: {}]
  %s2 = inlined_call_operand.hbm [shape: f32[128,128], index: 2, kind: input, shape index: {}]
  %s3 = inlined_call_operand.hbm [shape: f32[2,128,128], index: 3, kind: output, shape index: {}]
  %s4 = sld [smem:[#allocation0]]
  $region65: #{tpu_custom_call.1} parent=0
    _
  %s6 = ssub.s32 1, %s4
  %s7 = scalar_select 0, %s6, %s4
  $region1: #{tpu_custom_call.1} parent=0
    #allocation3 [shape = 'u8[8192]{0}', space=vmem, size = 0x2000, scoped, tag = 'input window, operand 0']
    #allocation4 [shape = 's32[2]{0}', space=sflag, size = 0x8, scoped, tag = 'scoped memory for tpu_custom_call.1']
    #allocation5 [shape = 's32[2]{0}', space=sflag, size = 0x8, scoped, tag = 'scoped memory for tpu_custom_call.1']
    #allocation6 [shape = 'u8[65536]{0}', space=vmem, size = 0x10000, scoped, tag = 'input window, operand 1, single buffered']
    #allocation7 [shape = 's32[1]{0}', space=sflag, size = 0x4, scoped, tag = 'scoped memory for tpu_custom_call.1']
    #allocation8 [shape = 'u8[65536]{0}', space=vmem, size = 0x10000, scoped, tag = 'input window, operand 2, single buffered']
    #allocation9 [shape = 'u8[131072]{0}', space=vmem, size = 0x20000, scoped, tag = 'output window, operand 0']
    %8 = vsyncpa [#allocation4], 0
    %s9 = scalar_lea.sflag [#allocation4], 1
    %10 = vsyncpa %s9, 0
    %11 = vsyncpa [#allocation7], 0
    %12 = vsyncpa [#allocation5], 0
    %s13 = scalar_lea.sflag [#allocation5], 1
    %14 = vsyncpa %s13, 0
    loop: start=0, step=1, limit=4
    $region2: #{tpu_custom_call.1} parent=1 // loop_pre_header
      _
    $region3: #{tpu_custom_call.1} parent=1 // loop_header
      %s16 = sphi 0, %s20
      %p17 = scmp.ge.s32.totalorder %s16, 4
      %s23 = sphi 0, %s35
      %s24 = sphi 0, %s31
      %s25 = sphi 0, %s23
      %s26 = sphi 0, %s24
      %s27 = sphi 0, %s25
      %s28 = sphi 0, %s26
      %s40 = sphi 0, %s42
      %s43 = sphi 0, %s40
      %s44 = sphi 0, %s43
      %s60 = sphi 0, %s44
      %s64 = sphi 0, %s64
      %s66 = sphi 0, %s64
      %s67 = sphi 0, %s66
      %s81 = sphi 0, %s67
      %s85 = sphi 0, %s85
      %s87 = sphi 0, %s85
      %s88 = sphi 0, %s87
      %s102 = sphi 0, %s88
      %s108 = sphi 0, %s110
      %s111 = sphi 0, %s108
      %s112 = sphi 0, %s111
      %s128 = sphi 0, %s112
    $region4: #{tpu_custom_call.1} parent=1 // loop_header_branch
      %19 = sbr.rel (%p17) target = $region8
    $region5: #{tpu_custom_call.1} parent=1 // loop_body
      %s21 = ssub.s32 %s16, 1
      %s22 = ssub.s32 %s16, 2
      %s29 = sadd.s32 1, %s24
      %p30 = scmp.ge.s32.totalorder %s29, 1
      %s31 = scalar_select %p30, 0, %s29
      %s32 = sadd.s32 1, %s23
      %s33 = scalar_select %p30, %s32, %s23
      %p34 = scmp.ge.s32.totalorder %s33, 2
      %s35 = scalar_select %p34, 0, %s33
      %s36 = ssub.s32 %s23, %s35
      %s37 = ssub.s32 %s24, %s31
      %s38 = sor.u32 %s36, %s37
      %p39 = scmp.eq.s32.totalorder %s38, 0
      %s41 = sadd.s32 %s40, 1
      %s42 = scalar_select %p39, %s40, %s41
      %p45 = pneg %p39
      %p46 = scmp.eq.s32.totalorder %s16, 1
      %p47 = por %p45, %p46
      %p48 = scmp.ne.s32.totalorder %s40, %s43
      %p49 = scmp.eq.s32.totalorder %s16, 0
      %p50 = por %p48, %p49
      %p51 = scmp.ne.s32.totalorder %s40, %s43
      %p52 = scmp.eq.s32.totalorder %s21, 1
      %p53 = por %p51, %p52
      %p54 = scmp.ne.s32.totalorder %s43, %s44
      %p55 = scmp.eq.s32.totalorder %s21, 0
      %p56 = por %p54, %p55
      %p57 = scmp.ne.s32.totalorder %s43, %s44
      %p58 = scmp.eq.s32.totalorder %s22, 1
      %p59 = por %p57, %p58
      %p61 = scmp.ne.s32.totalorder %s44, %s60
      %p62 = scmp.eq.s32.totalorder %s22, 0
      %p63 = por %p61, %p62
      %s65 = sadd.s32 %s64, 1
      %p68 = scmp.eq.s32.totalorder %s16, 1
      %p69 = scmp.ne.s32.totalorder %s64, %s66
      %p70 = scmp.eq.s32.totalorder %s16, 0
      %p71 = por %p69, %p70
      %p72 = scmp.ne.s32.totalorder %s64, %s66
      %p73 = scmp.eq.s32.totalorder %s21, 1
      %p74 = por %p72, %p73
      %p75 = scmp.ne.s32.totalorder %s66, %s67
      %p76 = scmp.eq.s32.totalorder %s21, 0
      %p77 = por %p75, %p76
      %p78 = scmp.ne.s32.totalorder %s66, %s67
      %p79 = scmp.eq.s32.totalorder %s22, 1
      %p80 = por %p78, %p79
      %p82 = scmp.ne.s32.totalorder %s67, %s81
      %p83 = scmp.eq.s32.totalorder %s22, 0
      %p84 = por %p82, %p83
      %s86 = sadd.s32 %s85, 1
      %p89 = scmp.eq.s32.totalorder %s16, 1
      %p90 = scmp.ne.s32.totalorder %s85, %s87
      %p91 = scmp.eq.s32.totalorder %s16, 0
      %p92 = por %p90, %p91
      %p93 = scmp.ne.s32.totalorder %s85, %s87
      %p94 = scmp.eq.s32.totalorder %s21, 1
      %p95 = por %p93, %p94
      %p96 = scmp.ne.s32.totalorder %s87, %s88
      %p97 = scmp.eq.s32.totalorder %s21, 0
      %p98 = por %p96, %p97
      %p99 = scmp.ne.s32.totalorder %s87, %s88
      %p100 = scmp.eq.s32.totalorder %s22, 1
      %p101 = por %p99, %p100
      %p103 = scmp.ne.s32.totalorder %s88, %s102
      %p104 = scmp.eq.s32.totalorder %s22, 0
      %p105 = por %p103, %p104
      %s106 = ssub.s32 %s23, %s35
      %p107 = scmp.eq.s32.totalorder %s106, 0
      %s109 = sadd.s32 %s108, 1
      %s110 = scalar_select %p107, %s108, %s109
      %p113 = pneg %p107
      %p114 = scmp.eq.s32.totalorder %s16, 1
      %p115 = por %p113, %p114
      %p116 = scmp.ne.s32.totalorder %s108, %s111
      %p117 = scmp.eq.s32.totalorder %s16, 0
      %p118 = por %p116, %p117
      %p119 = scmp.ne.s32.totalorder %s108, %s111
      %p120 = scmp.eq.s32.totalorder %s21, 1
      %p121 = por %p119, %p120
      %p122 = scmp.ne.s32.totalorder %s111, %s112
      %p123 = scmp.eq.s32.totalorder %s21, 0
      %p124 = por %p122, %p123
      %p125 = scmp.ne.s32.totalorder %s111, %s112
      %p126 = scmp.eq.s32.totalorder %s22, 1
      %p127 = por %p125, %p126
      %p129 = scmp.ne.s32.totalorder %s112, %s128
      %p130 = scmp.eq.s32.totalorder %s22, 0
      %p131 = por %p129, %p130
      %p132 = scmp.le.s32.totalorder 1, %s16
      %p133 = scmp.lt.s32.totalorder %s16, 3
      %p134 = pnand %p132, %p133
      %p135 = pneg %p134
      // Predicated region
      $region9: #{tpu_custom_call.1} parent=5 // pred_check
        _
      $region10: #{tpu_custom_call.1} parent=5 // pred_check_branch
        %137 = sbr.rel (%p134) target = $region12
      $region11: #{tpu_custom_call.1} parent=5 // pred_region
        %s138 = ssub.s32 %s16, 1
        // Predicated region
        $region13: #{tpu_custom_call.1} parent=11 // pred_check
          %p139 = pneg %p77
        $region14: #{tpu_custom_call.1} parent=11 // pred_check_branch
          %141 = sbr.rel (%p139) target = $region16
        $region15: #{tpu_custom_call.1} parent=11 // pred_region
          %143 = vsyncadd [#allocation7], 0
          %s144 = sshll.u32 %s1, 4
          %s145 = int_to_ptr.hbm [resolvable:$true] %s144
          %s146 = sshll.u32 [#allocation6], 4
          %s147 = int_to_ptr.vmem [resolvable:$true] %s146
          %152 = dma.hbm_to_vmem [thread:$0]  %s145, 2048, %s147, [#allocation7], 128, 128, 8
        $region16: #{tpu_custom_call.1} parent=11 // pred_fallthru
          _
        // Predicated region
        $region17: #{tpu_custom_call.1} parent=11 // pred_check
          %p153 = pneg %p98
        $region18: #{tpu_custom_call.1} parent=11 // pred_check_branch
          %155 = sbr.rel (%p153) target = $region20
        $region19: #{tpu_custom_call.1} parent=11 // pred_region
          %157 = vsyncadd [#allocation7], 0
          %s158 = sshll.u32 %s2, 4
          %s159 = int_to_ptr.hbm [resolvable:$true] %s158
          %s160 = sshll.u32 [#allocation8], 4
          %s161 = int_to_ptr.vmem [resolvable:$true] %s160
          %166 = dma.hbm_to_vmem [thread:$0]  %s159, 2048, %s161, [#allocation7], 128, 128, 8
        $region20: #{tpu_custom_call.1} parent=11 // pred_fallthru
          _
      $region12: #{tpu_custom_call.1} parent=5 // pred_fallthru
        _
      %p167 = scmp.lt.s32.totalorder %s16, 2
      // Predicated region
      $region21: #{tpu_custom_call.1} parent=5 // pred_check
        %p168 = pneg %p167
      $region22: #{tpu_custom_call.1} parent=5 // pred_check_branch
        %170 = sbr.rel (%p168) target = $region24
      $region23: #{tpu_custom_call.1} parent=5 // pred_region
        // Predicated region
        $region25: #{tpu_custom_call.1} parent=23 // pred_check
          %p171 = pneg %p50
        $region26: #{tpu_custom_call.1} parent=23 // pred_check_branch
          %173 = sbr.rel (%p171) target = $region28
        $region27: #{tpu_custom_call.1} parent=23 // pred_region
          %s174 = sand.u32 %s40, 1
          %s175 = scalar_lea.sflag [#allocation4], %s174
          %s176 = sand.u32 %s40, 1
          %s177 = smul.addr %s176, 8
          %s178 = scalar_lea.vmem [#allocation3], %s177
          %180 = vsyncadd %s175, 0
          %s181 = sadd.s32 %s24, %s23
          %s182 = smul.addr %s181, 8
          %s183 = scalar_lea.hbm %s0, %s182
          %s185 = sshll.u32 %s183, 4
          %s186 = int_to_ptr.hbm [resolvable:$true] %s185
          %s187 = sshll.u32 %s178, 4
          %s188 = int_to_ptr.vmem [resolvable:$true] %s187
          %190 = dma.hbm_to_vmem [thread:$0]  %s186, 128, %s188, %s175
        $region28: #{tpu_custom_call.1} parent=23 // pred_fallthru
          _
      $region24: #{tpu_custom_call.1} parent=5 // pred_fallthru
        _
      %p191 = scmp.le.s32.totalorder 1, %s16
      %p192 = scmp.lt.s32.totalorder %s16, 3
      %p193 = pnand %p191, %p192
      %p194 = pneg %p193
      // Predicated region
      $region29: #{tpu_custom_call.1} parent=5 // pred_check
        _
      $region30: #{tpu_custom_call.1} parent=5 // pred_check_branch
        %196 = sbr.rel (%p193) target = $region32
      $region31: #{tpu_custom_call.1} parent=5 // pred_region
        %s197 = ssub.s32 %s16, 1
        %s198 = sand.u32 %s43, 1
        %s199 = scalar_lea.sflag [#allocation4], %s198
        %s200 = sand.u32 %s43, 1
        %s201 = smul.addr %s200, 8
        %s202 = scalar_lea.vmem [#allocation3], %s201
        // Predicated region
        $region33: #{tpu_custom_call.1} parent=31 // pred_check
          %p203 = pneg %p56
        $region34: #{tpu_custom_call.1} parent=31 // pred_check_branch
          %205 = sbr.rel (%p203) target = $region36
        $region35: #{tpu_custom_call.1} parent=31 // pred_region
          %207 = dma.done %s199, 128
        $region36: #{tpu_custom_call.1} parent=31 // pred_fallthru
          _
        // Predicated region
        $region37: #{tpu_custom_call.1} parent=31 // pred_check
          %p208 = pneg %p77
        $region38: #{tpu_custom_call.1} parent=31 // pred_check_branch
          %210 = sbr.rel (%p208) target = $region40
        $region39: #{tpu_custom_call.1} parent=31 // pred_region
          %212 = dma.done [#allocation7], 2048
        $region40: #{tpu_custom_call.1} parent=31 // pred_fallthru
          _
        // Predicated region
        $region41: #{tpu_custom_call.1} parent=31 // pred_check
          %p213 = pneg %p98
        $region42: #{tpu_custom_call.1} parent=31 // pred_check_branch
          %215 = sbr.rel (%p213) target = $region44
        $region43: #{tpu_custom_call.1} parent=31 // pred_region
          %217 = dma.done [#allocation7], 2048
        $region44: #{tpu_custom_call.1} parent=31 // pred_fallthru
          _
        %s218 = sand.u32 %s43, 1
        %s219 = scalar_lea.sflag [#allocation4], %s218
        %s220 = sand.u32 %s43, 1
        %s221 = smul.addr %s220, 8
        %s222 = scalar_lea.vmem [#allocation3], %s221
        %p223 = pneg %p56
        %p224 = pneg %p53
        %p225 = pneg %p77
        %p226 = pneg %p74
        %p227 = pneg %p98
        %p228 = pneg %p95
        %p229 = pneg %p124
        %p230 = pneg %p121
        %s231 = sand.u32 %s111, 1
        %s232 = scalar_lea.sflag [#allocation5], %s231
        %s233 = sand.u32 %s111, 1
        %s234 = smul.addr %s233, 128
        %s235 = scalar_lea.vmem [#allocation9], %s234
        %p236 = scmp.eq.s32.totalorder %s26, 0
        // Predicated region
        $region45: #{tpu_custom_call.1} parent=31 // pred_check
          %p237 = pneg %p236
        $region46: #{tpu_custom_call.1} parent=31 // pred_check_branch
          %239 = sbr.rel (%p237) target = $region48
        $region47: #{tpu_custom_call.1} parent=31 // pred_region
          %240 = vst [vmem:[#allocation2] sm:$0xff] 0.0
          %241 = vst [vmem:[#allocation2 + $0x8] sm:$0xff] 0.0
          %242 = vst [vmem:[#allocation2 + $0x10] sm:$0xff] 0.0
          %243 = vst [vmem:[#allocation2 + $0x18] sm:$0xff] 0.0
          %244 = vst [vmem:[#allocation2 + $0x20] sm:$0xff] 0.0
          %245 = vst [vmem:[#allocation2 + $0x28] sm:$0xff] 0.0
          %246 = vst [vmem:[#allocation2 + $0x30] sm:$0xff] 0.0
          %247 = vst [vmem:[#allocation2 + $0x38] sm:$0xff] 0.0
          %248 = vst [vmem:[#allocation2 + $0x40] sm:$0xff] 0.0
          %249 = vst [vmem:[#allocation2 + $0x48] sm:$0xff] 0.0
          %250 = vst [vmem:[#allocation2 + $0x50] sm:$0xff] 0.0
          %251 = vst [vmem:[#allocation2 + $0x58] sm:$0xff] 0.0
          %252 = vst [vmem:[#allocation2 + $0x60] sm:$0xff] 0.0
          %253 = vst [vmem:[#allocation2 + $0x68] sm:$0xff] 0.0
          %254 = vst [vmem:[#allocation2 + $0x70] sm:$0xff] 0.0
          %255 = vst [vmem:[#allocation2 + $0x78] sm:$0xff] 0.0
        $region48: #{tpu_custom_call.1} parent=31 // pred_fallthru
          _
        %v256 = vld [vmem:[%s202] sm:$0xff]
        %v257 = vld [vmem:[#allocation6] sm:$0xff]
        %v258 = vld [vmem:[#allocation6 + $0x8] sm:$0xff]
        %v259 = vld [vmem:[#allocation6 + $0x10] sm:$0xff]
        %v260 = vld [vmem:[#allocation6 + $0x18] sm:$0xff]
        %v261 = vld [vmem:[#allocation6 + $0x20] sm:$0xff]
        %v262 = vld [vmem:[#allocation6 + $0x28] sm:$0xff]
        %v263 = vld [vmem:[#allocation6 + $0x30] sm:$0xff]
        %v264 = vld [vmem:[#allocation6 + $0x38] sm:$0xff]
        %v265 = vld [vmem:[#allocation6 + $0x40] sm:$0xff]
        %v266 = vld [vmem:[#allocation6 + $0x48] sm:$0xff]
        %v267 = vld [vmem:[#allocation6 + $0x50] sm:$0xff]
        %v268 = vld [vmem:[#allocation6 + $0x58] sm:$0xff]
        %v269 = vld [vmem:[#allocation6 + $0x60] sm:$0xff]
        %v270 = vld [vmem:[#allocation6 + $0x68] sm:$0xff]
        %v271 = vld [vmem:[#allocation6 + $0x70] sm:$0xff]
        %v272 = vld [vmem:[#allocation6 + $0x78] sm:$0xff]
        %273 = vmatpush.msra.mxu0 %v272
        %274 = vmatpush.msra.mxu0 %v271
        %275 = vmatpush.msra.mxu0 %v270
        %276 = vmatpush.msra.mxu0 %v269
        %277 = vmatpush.msra.mxu0 %v268
        %278 = vmatpush.msra.mxu0 %v267
        %279 = vmatpush.msra.mxu0 %v266
        %280 = vmatpush.msra.mxu0 %v265
        %281 = vmatpush.msra.mxu0 %v264
        %282 = vmatpush.msra.mxu0 %v263
        %283 = vmatpush.msra.mxu0 %v262
        %284 = vmatpush.msra.mxu0 %v261
        %285 = vmatpush.msra.mxu0 %v260
        %286 = vmatpush.msra.mxu0 %v259
        %287 = vmatpush.msra.mxu0 %v258
        %288 = vmatpush.msra.mxu0 %v257
        %289 = vmatmul.f32.gmra.mxu0 %v256
        %v290 = vpop.f32.mrf.mxu0
        %v291 = vadd.f32 0.0, %v290
        %292 = vdwg.mxu0
        %v293 = vld [vmem:[#allocation2] sm:$0xff]
        %v294 = vld [vmem:[#allocation2 + $0x8] sm:$0xff]
        %v295 = vld [vmem:[#allocation2 + $0x10] sm:$0xff]
        %v296 = vld [vmem:[#allocation2 + $0x18] sm:$0xff]
        %v297 = vld [vmem:[#allocation2 + $0x20] sm:$0xff]
        %v298 = vld [vmem:[#allocation2 + $0x28] sm:$0xff]
        %v299 = vld [vmem:[#allocation2 + $0x30] sm:$0xff]
        %v300 = vld [vmem:[#allocation2 + $0x38] sm:$0xff]
        %v301 = vld [vmem:[#allocation2 + $0x40] sm:$0xff]
        %v302 = vld [vmem:[#allocation2 + $0x48] sm:$0xff]
        %v303 = vld [vmem:[#allocation2 + $0x50] sm:$0xff]
        %v304 = vld [vmem:[#allocation2 + $0x58] sm:$0xff]
        %v305 = vld [vmem:[#allocation2 + $0x60] sm:$0xff]
        %v306 = vld [vmem:[#allocation2 + $0x68] sm:$0xff]
        %v307 = vld [vmem:[#allocation2 + $0x70] sm:$0xff]
        %v308 = vld [vmem:[#allocation2 + $0x78] sm:$0xff]
        %309 = vxpose.xlu0.b32.start [1/16] %v291, 128
        %310 = vxpose.xlu0.b32.cont [2/16] 0.0, 128
        %311 = vxpose.xlu0.b32.cont [3/16] 0.0, 128
        %312 = vxpose.xlu0.b32.cont [4/16] 0.0, 128
        %313 = vxpose.xlu0.b32.cont [5/16] 0.0, 128
        %314 = vxpose.xlu0.b32.cont [6/16] 0.0, 128
        %315 = vxpose.xlu0.b32.cont [7/16] 0.0, 128
        %316 = vxpose.xlu0.b32.cont [8/16] 0.0, 128
        %317 = vxpose.xlu0.b32.cont [9/16] 0.0, 128
        %318 = vxpose.xlu0.b32.cont [10/16] 0.0, 128
        %319 = vxpose.xlu0.b32.cont [11/16] 0.0, 128
        %320 = vxpose.xlu0.b32.cont [12/16] 0.0, 128
        %321 = vxpose.xlu0.b32.cont [13/16] 0.0, 128
        %322 = vxpose.xlu0.b32.cont [14/16] 0.0, 128
        %323 = vxpose.xlu0.b32.cont [15/16] 0.0, 128
        %324 = vxpose.xlu0.b32.end [16/16] 0.0, 128
        %v325 = vpop.trf.xlu0
        %v326 = vpop.trf.xlu0
        %v327 = vpop.trf.xlu0
        %v328 = vpop.trf.xlu0
        %v329 = vpop.trf.xlu0
        %v330 = vpop.trf.xlu0
        %v331 = vpop.trf.xlu0
        %v332 = vpop.trf.xlu0
        %v333 = vpop.trf.xlu0
        %v334 = vpop.trf.xlu0
        %v335 = vpop.trf.xlu0
        %v336 = vpop.trf.xlu0
        %v337 = vpop.trf.xlu0
        %v338 = vpop.trf.xlu0
        %v339 = vpop.trf.xlu0
        %v340 = vpop.trf.xlu0
        %vm341 = vcmask 64512
        %v343 = vsel %vm341, %v325, 0
        %v346 = vsel %vm341, %v326, 0
        %v349 = vsel %vm341, %v327, 0
        %v352 = vsel %vm341, %v328, 0
        %v355 = vsel %vm341, %v329, 0
        %v358 = vsel %vm341, %v330, 0
        %v361 = vsel %vm341, %v331, 0
        %v364 = vsel %vm341, %v332, 0
        %v367 = vsel %vm341, %v333, 0
        %v370 = vsel %vm341, %v334, 0
        %v373 = vsel %vm341, %v335, 0
        %v376 = vsel %vm341, %v336, 0
        %v379 = vsel %vm341, %v337, 0
        %v382 = vsel %vm341, %v338, 0
        %v385 = vsel %vm341, %v339, 0
        %v388 = vsel %vm341, %v340, 0
        %390 = vmatpush.msra.mxu0 0.0
        %391 = vmatpush.msra.mxu0 0.0
        %392 = vmatpush.msra.mxu0 0.0
        %393 = vmatpush.msra.mxu0 0.0
        %394 = vmatpush.msra.mxu0 0.0
        %395 = vmatpush.msra.mxu0 0.0
        %396 = vmatpush.msra.mxu0 0.0
        %397 = vmatpush.msra.mxu0 0.0
        %398 = vmatpush.msra.mxu0 0.0
        %399 = vmatpush.msra.mxu0 0.0
        %400 = vmatpush.msra.mxu0 0.0
        %401 = vmatpush.msra.mxu0 0.0
        %402 = vmatpush.msra.mxu0 0.0
        %403 = vmatpush.msra.mxu0 0.0
        %404 = vmatpush.msra.mxu0 0.0
        %405 = vmatpush.msra.mxu0 %v291
        %406 = vmatmul.f32.gmra.mxu0 %v343
        %v407 = vpop.f32.mrf.mxu0
        %v408 = vadd.f32 0.0, %v407
        %409 = vmatmul.f32.gmra.mxu0 %v346
        %v410 = vpop.f32.mrf.mxu0
        %v411 = vadd.f32 0.0, %v410
        %412 = vmatmul.f32.gmra.mxu0 %v349
        %v413 = vpop.f32.mrf.mxu0
        %v414 = vadd.f32 0.0, %v413
        %415 = vmatmul.f32.gmra.mxu0 %v352
        %v416 = vpop.f32.mrf.mxu0
        %v417 = vadd.f32 0.0, %v416
        %418 = vmatmul.f32.gmra.mxu0 %v355
        %v419 = vpop.f32.mrf.mxu0
        %v420 = vadd.f32 0.0, %v419
        %421 = vmatmul.f32.gmra.mxu0 %v358
        %v422 = vpop.f32.mrf.mxu0
        %v423 = vadd.f32 0.0, %v422
        %424 = vmatmul.f32.gmra.mxu0 %v361
        %v425 = vpop.f32.mrf.mxu0
        %v426 = vadd.f32 0.0, %v425
        %427 = vmatmul.f32.gmra.mxu0 %v364
        %v428 = vpop.f32.mrf.mxu0
        %v429 = vadd.f32 0.0, %v428
        %430 = vmatmul.f32.gmra.mxu0 %v367
        %v431 = vpop.f32.mrf.mxu0
        %v432 = vadd.f32 0.0, %v431
        %433 = vmatmul.f32.gmra.mxu0 %v370
        %v434 = vpop.f32.mrf.mxu0
        %v435 = vadd.f32 0.0, %v434
        %436 = vmatmul.f32.gmra.mxu0 %v373
        %v437 = vpop.f32.mrf.mxu0
        %v438 = vadd.f32 0.0, %v437
        %439 = vmatmul.f32.gmra.mxu0 %v376
        %v440 = vpop.f32.mrf.mxu0
        %v441 = vadd.f32 0.0, %v440
        %442 = vmatmul.f32.gmra.mxu0 %v379
        %v443 = vpop.f32.mrf.mxu0
        %v444 = vadd.f32 0.0, %v443
        %445 = vmatmul.f32.gmra.mxu0 %v382
        %v446 = vpop.f32.mrf.mxu0
        %v447 = vadd.f32 0.0, %v446
        %448 = vmatmul.f32.gmra.mxu0 %v385
        %v449 = vpop.f32.mrf.mxu0
        %v450 = vadd.f32 0.0, %v449
        %451 = vmatmul.f32.gmra.mxu0 %v388
        %v452 = vpop.f32.mrf.mxu0
        %v453 = vadd.f32 0.0, %v452
        %454 = vdwg.mxu0
        %v455 = vadd.f32 %v293, %v408
        %v456 = vadd.f32 %v294, %v411
        %v457 = vadd.f32 %v295, %v414
        %v458 = vadd.f32 %v296, %v417
        %v459 = vadd.f32 %v297, %v420
        %v460 = vadd.f32 %v298, %v423
        %v461 = vadd.f32 %v299, %v426
        %v462 = vadd.f32 %v300, %v429
        %v463 = vadd.f32 %v301, %v432
        %v464 = vadd.f32 %v302, %v435
        %v465 = vadd.f32 %v303, %v438
        %v466 = vadd.f32 %v304, %v441
        %v467 = vadd.f32 %v305, %v444
        %v468 = vadd.f32 %v306, %v447
        %v469 = vadd.f32 %v307, %v450
        %v470 = vadd.f32 %v308, %v453
        %471 = vst [vmem:[#allocation2] sm:$0xff] %v455
        %472 = vst [vmem:[#allocation2 + $0x8] sm:$0xff] %v456
        %473 = vst [vmem:[#allocation2 + $0x10] sm:$0xff] %v457
        %474 = vst [vmem:[#allocation2 + $0x18] sm:$0xff] %v458
        %475 = vst [vmem:[#allocation2 + $0x20] sm:$0xff] %v459
        %476 = vst [vmem:[#allocation2 + $0x28] sm:$0xff] %v460
        %477 = vst [vmem:[#allocation2 + $0x30] sm:$0xff] %v461
        %478 = vst [vmem:[#allocation2 + $0x38] sm:$0xff] %v462
        %479 = vst [vmem:[#allocation2 + $0x40] sm:$0xff] %v463
        %480 = vst [vmem:[#allocation2 + $0x48] sm:$0xff] %v464
        %481 = vst [vmem:[#allocation2 + $0x50] sm:$0xff] %v465
        %482 = vst [vmem:[#allocation2 + $0x58] sm:$0xff] %v466
        %483 = vst [vmem:[#allocation2 + $0x60] sm:$0xff] %v467
        %484 = vst [vmem:[#allocation2 + $0x68] sm:$0xff] %v468
        %485 = vst [vmem:[#allocation2 + $0x70] sm:$0xff] %v469
        %486 = vst [vmem:[#allocation2 + $0x78] sm:$0xff] %v470
        // Predicated region
        $region49: #{tpu_custom_call.1} parent=31 // pred_check
          %p487 = pneg %p236
        $region50: #{tpu_custom_call.1} parent=31 // pred_check_branch
          %489 = sbr.rel (%p487) target = $region52
        $region51: #{tpu_custom_call.1} parent=31 // pred_region
          %v490 = vld [vmem:[#allocation2] sm:$0xff]
          %v491 = vld [vmem:[#allocation2 + $0x8] sm:$0xff]
          %v492 = vld [vmem:[#allocation2 + $0x10] sm:$0xff]
          %v493 = vld [vmem:[#allocation2 + $0x18] sm:$0xff]
          %v494 = vld [vmem:[#allocation2 + $0x20] sm:$0xff]
          %v495 = vld [vmem:[#allocation2 + $0x28] sm:$0xff]
          %v496 = vld [vmem:[#allocation2 + $0x30] sm:$0xff]
          %v497 = vld [vmem:[#allocation2 + $0x38] sm:$0xff]
          %v498 = vld [vmem:[#allocation2 + $0x40] sm:$0xff]
          %v499 = vld [vmem:[#allocation2 + $0x48] sm:$0xff]
          %v500 = vld [vmem:[#allocation2 + $0x50] sm:$0xff]
          %v501 = vld [vmem:[#allocation2 + $0x58] sm:$0xff]
          %v502 = vld [vmem:[#allocation2 + $0x60] sm:$0xff]
          %v503 = vld [vmem:[#allocation2 + $0x68] sm:$0xff]
          %v504 = vld [vmem:[#allocation2 + $0x70] sm:$0xff]
          %v505 = vld [vmem:[#allocation2 + $0x78] sm:$0xff]
          %v506 = vld [vmem:[#allocation8] sm:$0xff]
          %v507 = vld [vmem:[#allocation8 + $0x8] sm:$0xff]
          %v508 = vld [vmem:[#allocation8 + $0x10] sm:$0xff]
          %v509 = vld [vmem:[#allocation8 + $0x18] sm:$0xff]
          %v510 = vld [vmem:[#allocation8 + $0x20] sm:$0xff]
          %v511 = vld [vmem:[#allocation8 + $0x28] sm:$0xff]
          %v512 = vld [vmem:[#allocation8 + $0x30] sm:$0xff]
          %v513 = vld [vmem:[#allocation8 + $0x38] sm:$0xff]
          %v514 = vld [vmem:[#allocation8 + $0x40] sm:$0xff]
          %v515 = vld [vmem:[#allocation8 + $0x48] sm:$0xff]
          %v516 = vld [vmem:[#allocation8 + $0x50] sm:$0xff]
          %v517 = vld [vmem:[#allocation8 + $0x58] sm:$0xff]
          %v518 = vld [vmem:[#allocation8 + $0x60] sm:$0xff]
          %v519 = vld [vmem:[#allocation8 + $0x68] sm:$0xff]
          %v520 = vld [vmem:[#allocation8 + $0x70] sm:$0xff]
          %v521 = vld [vmem:[#allocation8 + $0x78] sm:$0xff]
          %v522 = vmul.f32 %v490, %v506
          %v523 = vmul.f32 %v491, %v507
          %v524 = vmul.f32 %v492, %v508
          %v525 = vmul.f32 %v493, %v509
          %v526 = vmul.f32 %v494, %v510
          %v527 = vmul.f32 %v495, %v511
          %v528 = vmul.f32 %v496, %v512
          %v529 = vmul.f32 %v497, %v513
          %v530 = vmul.f32 %v498, %v514
          %v531 = vmul.f32 %v499, %v515
          %v532 = vmul.f32 %v500, %v516
          %v533 = vmul.f32 %v501, %v517
          %v534 = vmul.f32 %v502, %v518
          %v535 = vmul.f32 %v503, %v519
          %v536 = vmul.f32 %v504, %v520
          %v537 = vmul.f32 %v505, %v521
          %538 = vst [vmem:[%s235] sm:$0xff] %v522
          %539 = vst [vmem:[%s235 + $0x8] sm:$0xff] %v523
          %540 = vst [vmem:[%s235 + $0x10] sm:$0xff] %v524
          %541 = vst [vmem:[%s235 + $0x18] sm:$0xff] %v525
          %542 = vst [vmem:[%s235 + $0x20] sm:$0xff] %v526
          %543 = vst [vmem:[%s235 + $0x28] sm:$0xff] %v527
          %544 = vst [vmem:[%s235 + $0x30] sm:$0xff] %v528
          %545 = vst [vmem:[%s235 + $0x38] sm:$0xff] %v529
          %546 = vst [vmem:[%s235 + $0x40] sm:$0xff] %v530
          %547 = vst [vmem:[%s235 + $0x48] sm:$0xff] %v531
          %548 = vst [vmem:[%s235 + $0x50] sm:$0xff] %v532
          %549 = vst [vmem:[%s235 + $0x58] sm:$0xff] %v533
          %550 = vst [vmem:[%s235 + $0x60] sm:$0xff] %v534
          %551 = vst [vmem:[%s235 + $0x68] sm:$0xff] %v535
          %552 = vst [vmem:[%s235 + $0x70] sm:$0xff] %v536
          %553 = vst [vmem:[%s235 + $0x78] sm:$0xff] %v537
        $region52: #{tpu_custom_call.1} parent=31 // pred_fallthru
          _
        %s554 = sand.u32 %s111, 1
        %s555 = scalar_lea.sflag [#allocation5], %s554
        %s556 = sand.u32 %s111, 1
        %s557 = smul.addr %s556, 128
        %s558 = scalar_lea.vmem [#allocation9], %s557
        // Predicated region
        $region53: #{tpu_custom_call.1} parent=31 // pred_check
          %p559 = pneg %p121
        $region54: #{tpu_custom_call.1} parent=31 // pred_check_branch
          %561 = sbr.rel (%p559) target = $region56
        $region55: #{tpu_custom_call.1} parent=31 // pred_region
          %563 = vsyncadd %s555, 0
          %s564 = smul.addr %s25, 16
          %s565 = smul.addr %s564, 8
          %s566 = scalar_lea.hbm %s3, %s565
          %s567 = sshll.u32 %s558, 4
          %s568 = int_to_ptr.vmem [resolvable:$true] %s567
          %s569 = sshll.u32 %s566, 4
          %s570 = int_to_ptr.hbm [resolvable:$true] %s569
          %575 = dma.vmem_to_hbm [thread:$0]  %s568, 2048, %s570, %s555, 128, 128, 8
        $region56: #{tpu_custom_call.1} parent=31 // pred_fallthru
          _
      $region32: #{tpu_custom_call.1} parent=5 // pred_fallthru
        _
      %p576 = scmp.le.s32.totalorder 2, %s16
      // Predicated region
      $region57: #{tpu_custom_call.1} parent=5 // pred_check
        %p577 = pneg %p576
      $region58: #{tpu_custom_call.1} parent=5 // pred_check_branch
        %579 = sbr.rel (%p577) target = $region60
      $region59: #{tpu_custom_call.1} parent=5 // pred_region
        %s580 = ssub.s32 %s16, 2
        // Predicated region
        $region61: #{tpu_custom_call.1} parent=59 // pred_check
          %p581 = pneg %p127
        $region62: #{tpu_custom_call.1} parent=59 // pred_check_branch
          %583 = sbr.rel (%p581) target = $region64
        $region63: #{tpu_custom_call.1} parent=59 // pred_region
          %s584 = sand.u32 %s112, 1
          %s585 = scalar_lea.sflag [#allocation5], %s584
          %s586 = sand.u32 %s112, 1
          %s587 = smul.addr %s586, 128
          %s588 = scalar_lea.vmem [#allocation9], %s587
          %590 = dma.done %s585, 2048
        $region64: #{tpu_custom_call.1} parent=59 // pred_fallthru
          _
      $region60: #{tpu_custom_call.1} parent=5 // pred_fallthru
        _
    $region6: #{tpu_custom_call.1} parent=1 // loop_footer
      %s20 = sadd.s32 1, %s16
    $region7: #{tpu_custom_call.1} parent=1 // loop_footer_branch
      %15 = sbr.rel target = $region3
    $region8: #{tpu_custom_call.1} parent=1 // loop_exit
      _
    %591 = vsyncpa [#allocation4], 1
    %s592 = scalar_lea.sflag [#allocation4], 1
    %593 = vsyncpa %s592, 1
    %594 = vsyncpa [#allocation7], 1
    %595 = vsyncpa [#allocation5], 1
    %s596 = scalar_lea.sflag [#allocation5], 1
    %597 = vsyncpa %s596, 1

</llo_original>
